<compile_context>
chip_gen: v7x
topology: tpu7x:2x2x1
jax: 0.10.0
libtpu: 0.0.40
codegen_flags: <defaults>
</compile_context>

<pallas_src>
import functools

import jax
import jax.numpy as jnp
from jax.experimental import pallas as pl
from jax.experimental.pallas import tpu as pltpu


def _deconv_phase_kernel(x_ref, w_ref, b_ref, g_ref, bt_ref, pool_ref, o_ref,
                         *, H, W, Cin, Cout, isn, eps):
    """One batch element; all 4 stride-2 output phases at once.

    x_ref    : (H+2, W+2, Cin)   undilated NHWC input, spatially padded by 1
    w_ref    : (9*Cin, 4*Cout)   per-phase 3x3 taps flattened into one K slab
    b_ref    : (1, 4*Cout)       conv bias, tiled per phase column
    g_ref    : (1, 4*Cout)       InstanceNorm gamma (tiled)   [used iff isn]
    bt_ref   : (1, 4*Cout)       InstanceNorm beta  (tiled)   [used iff isn]
    pool_ref : (4*Cout, 4*Cout)  0/1 matrix summing the 4 phase columns per channel
    o_ref    : (H*W, 4*Cout)     columns ordered (ph*2+pw)*Cout + c
    """
    # im2col in VMEM: the 9 (a, b) taps are shared by all four output phases.
    taps = [x_ref[a:a + H, b:b + W, :] for a in range(3) for b in range(3)]
    patches = jnp.concatenate(taps, axis=-1).reshape(H * W, 9 * Cin)

    # Single fused-K matmul producing all 4 phases: (H*W, 9*Cin) @ (9*Cin, 4*Cout).
    acc = jnp.dot(patches, w_ref[...], preferred_element_type=jnp.float32)
    acc = acc + b_ref[...].astype(jnp.float32)

    if isn:
        # InstanceNorm2d(affine=True): per-(n, c) stats over the FULL output spatial
        # extent = all rows AND the channel's 4 phase columns.  One-pass sum /
        # sum-of-squares, pooled across phase columns with a tiny 0/1 matmul.
        count = jnp.float32(4 * H * W)
        s1 = jnp.sum(acc, axis=0, keepdims=True)           # (1, 4*Cout)
        s2 = jnp.sum(acc * acc, axis=0, keepdims=True)     # (1, 4*Cout)
        pool = pool_ref[...].astype(jnp.float32)
        mean = jnp.dot(s1, pool, preferred_element_type=jnp.float32) / count
        var = jnp.dot(s2, pool, preferred_element_type=jnp.float32) / count - mean * mean
        var = jnp.maximum(var, 0.0)
        acc = (acc - mean) * jax.lax.rsqrt(var + eps)
        acc = acc * g_ref[...].astype(jnp.float32) + bt_ref[...].astype(jnp.float32)

    o_ref[...] = jnp.tanh(acc).astype(o_ref.dtype)


def deconv_in_tanh(x_nchw, weight, bias, gamma, beta,
                   *, ks=6, pad=2, s=2, isn=False, eps=1e-5, mxu_dtype=None):
    """ConvTranspose2d(in_c, out_c, ks=6, padding=2, stride=2) [+ InstanceNorm2d] + Tanh.

    x_nchw : (N, Cin, H, W)
    weight : (Cin, Cout, ks, ks)   PyTorch ConvTranspose2d weight layout
    bias   : (Cout,)
    gamma, beta : (Cout,)          InstanceNorm affine params (used iff isn)
    returns: (N, Cout, 2H, 2W)
    """
    N, Cin, H, W = x_nchw.shape
    Cout = weight.shape[1]
    assert (ks, pad, s) == (6, 2, 2), "polyphase path is specialised to the module defaults"
    Ho, Wo = 2 * H, 2 * W
    Hp, Wp = H + 2, W + 2

    # ---- XLA glue: input layout prep (one small fused pass over the undilated input) ----
    xp = jnp.pad(jnp.transpose(x_nchw, (0, 2, 3, 1)),
                 ((0, 0), (1, 1), (1, 1), (0, 0)))                  # (N, H+2, W+2, Cin)

    # ---- weight prep: 2D slab, rows = (a*3+b)*Cin + cin, cols = (ph*2+pw)*Cout + c ----
    # Phase math (s=2, ks=6, pad=2): y[2i+ph, 2j+pw] uses tap kh = 4-2a+ph, kw = 4-2b+pw
    # applied to xpad[i+a, j+b] for a, b in {0,1,2}.
    cols = []
    for ph in range(2):
        for pw in range(2):
            taps = [weight[:, :, 4 - 2 * a + ph, 4 - 2 * b + pw]    # (Cin, Cout)
                    for a in range(3) for b in range(3)]
            cols.append(jnp.concatenate(taps, axis=0))              # (9*Cin, Cout)
    wall = jnp.concatenate(cols, axis=1)                            # (9*Cin, 4*Cout)

    bias4 = jnp.tile(bias, 4).reshape(1, 4 * Cout)
    gamma4 = jnp.tile(gamma, 4).reshape(1, 4 * Cout)
    beta4 = jnp.tile(beta, 4).reshape(1, 4 * Cout)
    cid = jnp.arange(4 * Cout) % Cout
    pool = (cid[:, None] == cid[None, :]).astype(jnp.float32)       # (4*Cout, 4*Cout)

    if mxu_dtype is not None:   # optional bf16 MXU operands (v6e/v7x); accum stays f32
        xp = xp.astype(mxu_dtype)
        wall = wall.astype(mxu_dtype)

    kern = functools.partial(_deconv_phase_kernel, H=H, W=W, Cin=Cin, Cout=Cout,
                             isn=isn, eps=eps)

    out = pl.pallas_call(
        kern,
        out_shape=jax.ShapeDtypeStruct((N, H * W, 4 * Cout), x_nchw.dtype),
        grid_spec=pltpu.PrefetchScalarGridSpec(
            num_scalar_prefetch=0,
            grid=(N,),
            in_specs=[
                pl.BlockSpec((None, Hp, Wp, Cin), lambda n: (n, 0, 0, 0)),
                pl.BlockSpec((9 * Cin, 4 * Cout), lambda n: (0, 0)),
                pl.BlockSpec((1, 4 * Cout), lambda n: (0, 0)),
                pl.BlockSpec((1, 4 * Cout), lambda n: (0, 0)),
                pl.BlockSpec((1, 4 * Cout), lambda n: (0, 0)),
                pl.BlockSpec((4 * Cout, 4 * Cout), lambda n: (0, 0)),
            ],
            out_specs=pl.BlockSpec((None, H * W, 4 * Cout), lambda n: (n, 0, 0)),
        ),
        compiler_params=pltpu.CompilerParams(
            dimension_semantics=("parallel",)),
    )(xp, wall, bias4, gamma4, beta4, pool)

    # ---- XLA glue: interleave the 4 phases back into NCHW (one pass over the output) ----
    out = out.reshape(N, H, W, 2, 2, Cout)            # [n, i, j, ph, pw, c]
    out = jnp.transpose(out, (0, 5, 1, 3, 2, 4))      # [n, c, i, ph, j, pw]
    return out.reshape(N, Cout, Ho, Wo)


def _reference(x_nchw, weight, bias, gamma, beta, *, ks, pad, s, isn, eps):
    # Pure-JAX reference: transposed conv == lhs-dilated conv with flipped kernel.
    wk = jnp.transpose(weight[:, :, ::-1, ::-1], (1, 0, 2, 3))      # OIHW
    out = jax.lax.conv_general_dilated(
        x_nchw, wk, window_strides=(1, 1),
        padding=[(ks - 1 - pad, ks - 1 - pad)] * 2,
        lhs_dilation=(s, s),
        dimension_numbers=("NCHW", "OIHW", "NCHW"),
        precision=jax.lax.Precision.HIGHEST)
    out = out + bias[None, :, None, None]
    if isn:
        mean = out.mean(axis=(2, 3), keepdims=True)
        var = ((out - mean) ** 2).mean(axis=(2, 3), keepdims=True)
        out = (out - mean) / jnp.sqrt(var + eps)
        out = out * gamma[None, :, None, None] + beta[None, :, None, None]
    return jnp.tanh(out)


if __name__ == "__main__":
    key = jax.random.PRNGKey(0)
    N, Cin, Cout, H, W = 2, 4, 4, 16, 16
    ks, pad, s = 6, 2, 2

    kx, kw_, kb = jax.random.split(key, 3)
    x = jax.random.normal(kx, (N, Cin, H, W), jnp.float32)
    bound = 1.0 / (Cin * ks * ks) ** 0.5                 # PyTorch-style init bound
    weight = jax.random.uniform(kw_, (Cin, Cout, ks, ks), jnp.float32,
                                minval=-bound, maxval=bound)
    bias = jax.random.uniform(kb, (Cout,), jnp.float32, minval=-bound, maxval=bound)
    gamma = jnp.ones((Cout,), jnp.float32)               # InstanceNorm affine init
    beta = jnp.zeros((Cout,), jnp.float32)

    ok = True
    for isn in (False, True):                            # module default is isn=False
        out = deconv_in_tanh(x, weight, bias, gamma, beta,
                             ks=ks, pad=pad, s=s, isn=isn)
        out = jax.block_until_ready(out)
        ref = _reference(x, weight, bias, gamma, beta,
                         ks=ks, pad=pad, s=s, isn=isn, eps=1e-5)
        if out.shape != (N, Cout, 2 * H, 2 * W):
            ok = False
        if not bool(jnp.allclose(out, ref, atol=2e-3, rtol=2e-3)):
            ok = False

    if ok:
        print("KERNEL_OK")
    else:
        raise SystemExit("mismatch vs reference")
</pallas_src>

<mosaic_0001>
module attributes {stable_mosaic.version = 11 : i64} {
  func.func @_deconv_phase_kernel(%arg0: i32, %arg1: memref<1x18x18x4xf32, #tpu.memory_space<vmem>>, %arg2: memref<36x16xf32, #tpu.memory_space<vmem>>, %arg3: memref<1x16xf32, #tpu.memory_space<vmem>>, %arg4: memref<1x16xf32, #tpu.memory_space<vmem>>, %arg5: memref<1x16xf32, #tpu.memory_space<vmem>>, %arg6: memref<16x16xf32, #tpu.memory_space<vmem>>, %arg7: memref<1x256x16xf32, #tpu.memory_space<vmem>>) attributes {dimension_semantics = [#tpu.dimension_semantics<parallel>], iteration_bounds = array<i64: 2>, scalar_prefetch = 0 : i64, scratch_operands = 0 : i64, tpu.core_type = #tpu.core_type<tc>, window_params = [{transform_indices = @transform_0, window_bounds = array<i64: 1, 18, 18, 4>}, {pipeline_mode = #tpu.pipeline_mode<synchronous>, transform_indices = @transform_1, window_bounds = array<i64: 36, 16>}, {pipeline_mode = #tpu.pipeline_mode<synchronous>, transform_indices = @transform_2, window_bounds = array<i64: 1, 16>}, {pipeline_mode = #tpu.pipeline_mode<synchronous>, transform_indices = @transform_3, window_bounds = array<i64: 1, 16>}, {pipeline_mode = #tpu.pipeline_mode<synchronous>, transform_indices = @transform_4, window_bounds = array<i64: 1, 16>}, {pipeline_mode = #tpu.pipeline_mode<synchronous>, transform_indices = @transform_5, window_bounds = array<i64: 16, 16>}, {transform_indices = @transform_6, window_bounds = array<i64: 1, 256, 16>}]} {
    %c0 = arith.constant 0 : index
    %c0_0 = arith.constant 0 : index
    %c0_1 = arith.constant 0 : index
    %c0_2 = arith.constant 0 : index
    %0 = vector.load %arg1[%c0, %c0_0, %c0_1, %c0_2] : memref<1x18x18x4xf32, #tpu.memory_space<vmem>>, vector<1x16x16x4xf32>
    %1 = vector.shape_cast %0 : vector<1x16x16x4xf32> to vector<16x16x4xf32>
    %c0_3 = arith.constant 0 : index
    %c0_4 = arith.constant 0 : index
    %c1 = arith.constant 1 : index
    %c0_5 = arith.constant 0 : index
    %2 = vector.load %arg1[%c0_3, %c0_4, %c1, %c0_5] : memref<1x18x18x4xf32, #tpu.memory_space<vmem>>, vector<1x16x16x4xf32>
    %3 = vector.shape_cast %2 : vector<1x16x16x4xf32> to vector<16x16x4xf32>
    %c0_6 = arith.constant 0 : index
    %c0_7 = arith.constant 0 : index
    %c2 = arith.constant 2 : index
    %c0_8 = arith.constant 0 : index
    %4 = vector.load %arg1[%c0_6, %c0_7, %c2, %c0_8] : memref<1x18x18x4xf32, #tpu.memory_space<vmem>>, vector<1x16x16x4xf32>
    %5 = vector.shape_cast %4 : vector<1x16x16x4xf32> to vector<16x16x4xf32>
    %c0_9 = arith.constant 0 : index
    %c1_10 = arith.constant 1 : index
    %c0_11 = arith.constant 0 : index
    %c0_12 = arith.constant 0 : index
    %6 = vector.load %arg1[%c0_9, %c1_10, %c0_11, %c0_12] : memref<1x18x18x4xf32, #tpu.memory_space<vmem>>, vector<1x16x16x4xf32>
    %7 = vector.shape_cast %6 : vector<1x16x16x4xf32> to vector<16x16x4xf32>
    %c0_13 = arith.constant 0 : index
    %c1_14 = arith.constant 1 : index
    %c1_15 = arith.constant 1 : index
    %c0_16 = arith.constant 0 : index
    %8 = vector.load %arg1[%c0_13, %c1_14, %c1_15, %c0_16] : memref<1x18x18x4xf32, #tpu.memory_space<vmem>>, vector<1x16x16x4xf32>
    %9 = vector.shape_cast %8 : vector<1x16x16x4xf32> to vector<16x16x4xf32>
    %c0_17 = arith.constant 0 : index
    %c1_18 = arith.constant 1 : index
    %c2_19 = arith.constant 2 : index
    %c0_20 = arith.constant 0 : index
    %10 = vector.load %arg1[%c0_17, %c1_18, %c2_19, %c0_20] : memref<1x18x18x4xf32, #tpu.memory_space<vmem>>, vector<1x16x16x4xf32>
    %11 = vector.shape_cast %10 : vector<1x16x16x4xf32> to vector<16x16x4xf32>
    %c0_21 = arith.constant 0 : index
    %c2_22 = arith.constant 2 : index
    %c0_23 = arith.constant 0 : index
    %c0_24 = arith.constant 0 : index
    %12 = vector.load %arg1[%c0_21, %c2_22, %c0_23, %c0_24] : memref<1x18x18x4xf32, #tpu.memory_space<vmem>>, vector<1x16x16x4xf32>
    %13 = vector.shape_cast %12 : vector<1x16x16x4xf32> to vector<16x16x4xf32>
    %c0_25 = arith.constant 0 : index
    %c2_26 = arith.constant 2 : index
    %c1_27 = arith.constant 1 : index
    %c0_28 = arith.constant 0 : index
    %14 = vector.load %arg1[%c0_25, %c2_26, %c1_27, %c0_28] : memref<1x18x18x4xf32, #tpu.memory_space<vmem>>, vector<1x16x16x4xf32>
    %15 = vector.shape_cast %14 : vector<1x16x16x4xf32> to vector<16x16x4xf32>
    %c0_29 = arith.constant 0 : index
    %c2_30 = arith.constant 2 : index
    %c2_31 = arith.constant 2 : index
    %c0_32 = arith.constant 0 : index
    %16 = vector.load %arg1[%c0_29, %c2_30, %c2_31, %c0_32] : memref<1x18x18x4xf32, #tpu.memory_space<vmem>>, vector<1x16x16x4xf32>
    %17 = vector.shape_cast %16 : vector<1x16x16x4xf32> to vector<16x16x4xf32>
    %18 = tpu.concatenate %1, %3, %5, %7, %9, %11, %13, %15, %17 in 2 : vector<16x16x4xf32>, vector<16x16x4xf32>, vector<16x16x4xf32>, vector<16x16x4xf32>, vector<16x16x4xf32>, vector<16x16x4xf32>, vector<16x16x4xf32>, vector<16x16x4xf32>, vector<16x16x4xf32> -> vector<16x16x36xf32>
    %19 = vector.shape_cast %18 : vector<16x16x36xf32> to vector<256x36xf32>
    %c0_33 = arith.constant 0 : index
    %c0_34 = arith.constant 0 : index
    %20 = vector.load %arg2[%c0_33, %c0_34] : memref<36x16xf32, #tpu.memory_space<vmem>>, vector<36x16xf32>
    %cst = arith.constant dense<0.000000e+00> : vector<256x16xf32>
    %21 = tpu.matmul %19, %20, %cst {dimension_numbers = #tpu.dot_dimension_numbers<[1], [0], [0], [1], [0, 0, 1, 1], [], []>} : vector<256x36xf32>, vector<36x16xf32>, vector<256x16xf32> -> vector<256x16xf32>
    %c0_35 = arith.constant 0 : index
    %c0_36 = arith.constant 0 : index
    %22 = vector.load %arg3[%c0_35, %c0_36] : memref<1x16xf32, #tpu.memory_space<vmem>>, vector<1x16xf32>
    %23 = vector.broadcast %22 : vector<1x16xf32> to vector<256x16xf32>
    %24 = arith.addf %21, %23 : vector<256x16xf32>
    %25 = math.tanh %24 : vector<256x16xf32>
    %c0_37 = arith.constant 0 : index
    %c0_38 = arith.constant 0 : index
    %c0_39 = arith.constant 0 : index
    %26 = vector.load %arg7[%c0_37, %c0_38, %c0_39] : memref<1x256x16xf32, #tpu.memory_space<vmem>>, vector<1x256x16xf32>
    %27 = vector.shape_cast %26 : vector<1x256x16xf32> to vector<256x16xf32>
    %28 = vector.shape_cast %25 : vector<256x16xf32> to vector<1x256x16xf32>
    tpu.vector_store %arg7[%c0_37, %c0_38, %c0_39], %28 {strides = array<i32>} : memref<1x256x16xf32, #tpu.memory_space<vmem>>, vector<1x256x16xf32>,
    return
  }
  func.func @transform_0(%arg0: i32) -> (i32, i32, i32, i32) {
    %c0_i32 = arith.constant 0 : i32
    %c0_i32_0 = arith.constant 0 : i32
    %c0_i32_1 = arith.constant 0 : i32
    %c0_i32_2 = arith.constant 0 : i32
    return %arg0, %c0_i32, %c0_i32_0, %c0_i32_1 : i32, i32, i32, i32
  }
  func.func @transform_1(%arg0: i32) -> (i32, i32) {
    %c0_i32 = arith.constant 0 : i32
    %c0_i32_0 = arith.constant 0 : i32
    %c0_i32_1 = arith.constant 0 : i32
    return %c0_i32, %c0_i32_0 : i32, i32
  }
  func.func @transform_2(%arg0: i32) -> (i32, i32) {
    %c0_i32 = arith.constant 0 : i32
    %c0_i32_0 = arith.constant 0 : i32
    %c0_i32_1 = arith.constant 0 : i32
    return %c0_i32, %c0_i32_0 : i32, i32
  }
  func.func @transform_3(%arg0: i32) -> (i32, i32) {
    %c0_i32 = arith.constant 0 : i32
    %c0_i32_0 = arith.constant 0 : i32
    %c0_i32_1 = arith.constant 0 : i32
    return %c0_i32, %c0_i32_0 : i32, i32
  }
  func.func @transform_4(%arg0: i32) -> (i32, i32) {
    %c0_i32 = arith.constant 0 : i32
    %c0_i32_0 = arith.constant 0 : i32
    %c0_i32_1 = arith.constant 0 : i32
    return %c0_i32, %c0_i32_0 : i32, i32
  }
  func.func @transform_5(%arg0: i32) -> (i32, i32) {
    %c0_i32 = arith.constant 0 : i32
    %c0_i32_0 = arith.constant 0 : i32
    %c0_i32_1 = arith.constant 0 : i32
    return %c0_i32, %c0_i32_0 : i32, i32
  }
  func.func @transform_6(%arg0: i32) -> (i32, i32, i32) {
    %c0_i32 = arith.constant 0 : i32
    %c0_i32_0 = arith.constant 0 : i32
    %c0_i32_1 = arith.constant 0 : i32
    return %arg0, %c0_i32, %c0_i32_0 : i32, i32, i32
  }
}

</mosaic_0001>

<llo_original>
// kernel: tpu_custom_call.1
$region0: #{tpu_custom_call.1}
  #allocation0 [shape = 'u32[]', space=smem, size = 0x4, offset = 0x4, fixed_abs, tag = 'smem constant byte address 0x4 - core index']
  #allocation1 [shape = 'u32[144,128]{1,0:T(1,128)}', space=vmem, size = 0x12000, scoped, tag = 'internal scratch']
  %s0 = inlined_call_operand.vmem [shape: f32[2,18,18,4], index: 0, kind: input, shape index: {}]
  %s1 = inlined_call_operand.vmem [shape: f32[36,16], index: 1, kind: input, shape index: {}]
  %s2 = inlined_call_operand.vmem [shape: f32[1,16], index: 2, kind: input, shape index: {}]
  %s3 = inlined_call_operand.vmem [shape: f32[1,16], index: 3, kind: input, shape index: {}]
  %s4 = inlined_call_operand.vmem [shape: f32[1,16], index: 4, kind: input, shape index: {}]
  %s5 = inlined_call_operand.vmem [shape: f32[16,16], index: 5, kind: input, shape index: {}]
  %s6 = inlined_call_operand.vmem [shape: f32[2,256,16], index: 6, kind: output, shape index: {}]
  %s7 = sld [smem:[#allocation0]]
  $region57: #{tpu_custom_call.1} parent=0
    _
  %s9 = ssub.s32 1, %s7
  %s10 = scalar_select 0, %s9, %s7
  loop: start=0, step=1, limit=4
  $region2: #{tpu_custom_call.1} parent=0 // loop_pre_header
    _
  $region3: #{tpu_custom_call.1} parent=0 // loop_header
    %s12 = sphi 0, %s16
    %p13 = scmp.ge.s32.totalorder %s12, 4
    %s22 = sphi 0, %s24
    %s25 = sphi 0, %s22
    %s26 = sphi 0, %s25
    %s42 = sphi 0, %s26
    %s46 = sphi 0, %s46
    %s48 = sphi 0, %s46
    %s49 = sphi 0, %s48
    %s63 = sphi 0, %s49
    %s67 = sphi 0, %s67
    %s69 = sphi 0, %s67
    %s70 = sphi 0, %s69
    %s84 = sphi 0, %s70
    %s88 = sphi 0, %s88
    %s90 = sphi 0, %s88
    %s91 = sphi 0, %s90
    %s105 = sphi 0, %s91
    %s109 = sphi 0, %s109
    %s111 = sphi 0, %s109
    %s112 = sphi 0, %s111
    %s126 = sphi 0, %s112
    %s130 = sphi 0, %s130
    %s132 = sphi 0, %s130
    %s133 = sphi 0, %s132
    %s147 = sphi 0, %s133
    %s153 = sphi 0, %s155
    %s156 = sphi 0, %s153
    %s157 = sphi 0, %s156
    %s173 = sphi 0, %s157
  $region4: #{tpu_custom_call.1} parent=0 // loop_header_branch
    %15 = sbr.rel (%p13) target = $region8
  $region5: #{tpu_custom_call.1} parent=0 // loop_body
    %s17 = ssub.s32 %s12, 1
    %s18 = ssub.s32 %s12, 2
    %s19 = sadd.s32 %s12, 1
    %s20 = ssub.s32 %s12, %s19
    %p21 = scmp.eq.s32.totalorder %s20, 0
    %s23 = sadd.s32 %s22, 1
    %s24 = scalar_select %p21, %s22, %s23
    %p27 = pneg %p21
    %p28 = scmp.eq.s32.totalorder %s12, 1
    %p29 = por %p27, %p28
    %p30 = scmp.ne.s32.totalorder %s22, %s25
    %p31 = scmp.eq.s32.totalorder %s12, 0
    %p32 = por %p30, %p31
    %p33 = scmp.ne.s32.totalorder %s22, %s25
    %p34 = scmp.eq.s32.totalorder %s17, 1
    %p35 = por %p33, %p34
    %p36 = scmp.ne.s32.totalorder %s25, %s26
    %p37 = scmp.eq.s32.totalorder %s17, 0
    %p38 = por %p36, %p37
    %p39 = scmp.ne.s32.totalorder %s25, %s26
    %p40 = scmp.eq.s32.totalorder %s18, 1
    %p41 = por %p39, %p40
    %p43 = scmp.ne.s32.totalorder %s26, %s42
    %p44 = scmp.eq.s32.totalorder %s18, 0
    %p45 = por %p43, %p44
    %s47 = sadd.s32 %s46, 1
    %p50 = scmp.eq.s32.totalorder %s12, 1
    %p51 = scmp.ne.s32.totalorder %s46, %s48
    %p52 = scmp.eq.s32.totalorder %s12, 0
    %p53 = por %p51, %p52
    %p54 = scmp.ne.s32.totalorder %s46, %s48
    %p55 = scmp.eq.s32.totalorder %s17, 1
    %p56 = por %p54, %p55
    %p57 = scmp.ne.s32.totalorder %s48, %s49
    %p58 = scmp.eq.s32.totalorder %s17, 0
    %p59 = por %p57, %p58
    %p60 = scmp.ne.s32.totalorder %s48, %s49
    %p61 = scmp.eq.s32.totalorder %s18, 1
    %p62 = por %p60, %p61
    %p64 = scmp.ne.s32.totalorder %s49, %s63
    %p65 = scmp.eq.s32.totalorder %s18, 0
    %p66 = por %p64, %p65
    %s68 = sadd.s32 %s67, 1
    %p71 = scmp.eq.s32.totalorder %s12, 1
    %p72 = scmp.ne.s32.totalorder %s67, %s69
    %p73 = scmp.eq.s32.totalorder %s12, 0
    %p74 = por %p72, %p73
    %p75 = scmp.ne.s32.totalorder %s67, %s69
    %p76 = scmp.eq.s32.totalorder %s17, 1
    %p77 = por %p75, %p76
    %p78 = scmp.ne.s32.totalorder %s69, %s70
    %p79 = scmp.eq.s32.totalorder %s17, 0
    %p80 = por %p78, %p79
    %p81 = scmp.ne.s32.totalorder %s69, %s70
    %p82 = scmp.eq.s32.totalorder %s18, 1
    %p83 = por %p81, %p82
    %p85 = scmp.ne.s32.totalorder %s70, %s84
    %p86 = scmp.eq.s32.totalorder %s18, 0
    %p87 = por %p85, %p86
    %s89 = sadd.s32 %s88, 1
    %p92 = scmp.eq.s32.totalorder %s12, 1
    %p93 = scmp.ne.s32.totalorder %s88, %s90
    %p94 = scmp.eq.s32.totalorder %s12, 0
    %p95 = por %p93, %p94
    %p96 = scmp.ne.s32.totalorder %s88, %s90
    %p97 = scmp.eq.s32.totalorder %s17, 1
    %p98 = por %p96, %p97
    %p99 = scmp.ne.s32.totalorder %s90, %s91
    %p100 = scmp.eq.s32.totalorder %s17, 0
    %p101 = por %p99, %p100
    %p102 = scmp.ne.s32.totalorder %s90, %s91
    %p103 = scmp.eq.s32.totalorder %s18, 1
    %p104 = por %p102, %p103
    %p106 = scmp.ne.s32.totalorder %s91, %s105
    %p107 = scmp.eq.s32.totalorder %s18, 0
    %p108 = por %p106, %p107
    %s110 = sadd.s32 %s109, 1
    %p113 = scmp.eq.s32.totalorder %s12, 1
    %p114 = scmp.ne.s32.totalorder %s109, %s111
    %p115 = scmp.eq.s32.totalorder %s12, 0
    %p116 = por %p114, %p115
    %p117 = scmp.ne.s32.totalorder %s109, %s111
    %p118 = scmp.eq.s32.totalorder %s17, 1
    %p119 = por %p117, %p118
    %p120 = scmp.ne.s32.totalorder %s111, %s112
    %p121 = scmp.eq.s32.totalorder %s17, 0
    %p122 = por %p120, %p121
    %p123 = scmp.ne.s32.totalorder %s111, %s112
    %p124 = scmp.eq.s32.totalorder %s18, 1
    %p125 = por %p123, %p124
    %p127 = scmp.ne.s32.totalorder %s112, %s126
    %p128 = scmp.eq.s32.totalorder %s18, 0
    %p129 = por %p127, %p128
    %s131 = sadd.s32 %s130, 1
    %p134 = scmp.eq.s32.totalorder %s12, 1
    %p135 = scmp.ne.s32.totalorder %s130, %s132
    %p136 = scmp.eq.s32.totalorder %s12, 0
    %p137 = por %p135, %p136
    %p138 = scmp.ne.s32.totalorder %s130, %s132
    %p139 = scmp.eq.s32.totalorder %s17, 1
    %p140 = por %p138, %p139
    %p141 = scmp.ne.s32.totalorder %s132, %s133
    %p142 = scmp.eq.s32.totalorder %s17, 0
    %p143 = por %p141, %p142
    %p144 = scmp.ne.s32.totalorder %s132, %s133
    %p145 = scmp.eq.s32.totalorder %s18, 1
    %p146 = por %p144, %p145
    %p148 = scmp.ne.s32.totalorder %s133, %s147
    %p149 = scmp.eq.s32.totalorder %s18, 0
    %p150 = por %p148, %p149
    %s151 = ssub.s32 %s12, %s19
    %p152 = scmp.eq.s32.totalorder %s151, 0
    %s154 = sadd.s32 %s153, 1
    %s155 = scalar_select %p152, %s153, %s154
    %p158 = pneg %p152
    %p159 = scmp.eq.s32.totalorder %s12, 1
    %p160 = por %p158, %p159
    %p161 = scmp.ne.s32.totalorder %s153, %s156
    %p162 = scmp.eq.s32.totalorder %s12, 0
    %p163 = por %p161, %p162
    %p164 = scmp.ne.s32.totalorder %s153, %s156
    %p165 = scmp.eq.s32.totalorder %s17, 1
    %p166 = por %p164, %p165
    %p167 = scmp.ne.s32.totalorder %s156, %s157
    %p168 = scmp.eq.s32.totalorder %s17, 0
    %p169 = por %p167, %p168
    %p170 = scmp.ne.s32.totalorder %s156, %s157
    %p171 = scmp.eq.s32.totalorder %s18, 1
    %p172 = por %p170, %p171
    %p174 = scmp.ne.s32.totalorder %s157, %s173
    %p175 = scmp.eq.s32.totalorder %s18, 0
    %p176 = por %p174, %p175
    %p177 = scmp.le.s32.totalorder 1, %s12
    %p178 = scmp.lt.s32.totalorder %s12, 3
    %p179 = pnand %p177, %p178
    %p180 = pneg %p179
    // Predicated region
    $region9: #{tpu_custom_call.1} parent=5 // pred_check
      _
    $region10: #{tpu_custom_call.1} parent=5 // pred_check_branch
      %182 = sbr.rel (%p179) target = $region12
    $region11: #{tpu_custom_call.1} parent=5 // pred_region
      %s183 = ssub.s32 %s12, 1
      // Predicated region
      $region13: #{tpu_custom_call.1} parent=11 // pred_check
        %p184 = pneg %p59
      $region14: #{tpu_custom_call.1} parent=11 // pred_check_branch
        %186 = sbr.rel (%p184) target = $region16
      $region15: #{tpu_custom_call.1} parent=11 // pred_region
        _
      $region16: #{tpu_custom_call.1} parent=11 // pred_fallthru
        _
      // Predicated region
      $region17: #{tpu_custom_call.1} parent=11 // pred_check
        %p187 = pneg %p80
      $region18: #{tpu_custom_call.1} parent=11 // pred_check_branch
        %189 = sbr.rel (%p187) target = $region20
      $region19: #{tpu_custom_call.1} parent=11 // pred_region
        _
      $region20: #{tpu_custom_call.1} parent=11 // pred_fallthru
        _
      // Predicated region
      $region21: #{tpu_custom_call.1} parent=11 // pred_check
        %p190 = pneg %p101
      $region22: #{tpu_custom_call.1} parent=11 // pred_check_branch
        %192 = sbr.rel (%p190) target = $region24
      $region23: #{tpu_custom_call.1} parent=11 // pred_region
        _
      $region24: #{tpu_custom_call.1} parent=11 // pred_fallthru
        _
      // Predicated region
      $region25: #{tpu_custom_call.1} parent=11 // pred_check
        %p193 = pneg %p122
      $region26: #{tpu_custom_call.1} parent=11 // pred_check_branch
        %195 = sbr.rel (%p193) target = $region28
      $region27: #{tpu_custom_call.1} parent=11 // pred_region
        _
      $region28: #{tpu_custom_call.1} parent=11 // pred_fallthru
        _
      // Predicated region
      $region29: #{tpu_custom_call.1} parent=11 // pred_check
        %p196 = pneg %p143
      $region30: #{tpu_custom_call.1} parent=11 // pred_check_branch
        %198 = sbr.rel (%p196) target = $region32
      $region31: #{tpu_custom_call.1} parent=11 // pred_region
        _
      $region32: #{tpu_custom_call.1} parent=11 // pred_fallthru
        _
    $region12: #{tpu_custom_call.1} parent=5 // pred_fallthru
      _
    %p199 = scmp.lt.s32.totalorder %s12, 2
    // Predicated region
    $region33: #{tpu_custom_call.1} parent=5 // pred_check
      %p200 = pneg %p199
    $region34: #{tpu_custom_call.1} parent=5 // pred_check_branch
      %202 = sbr.rel (%p200) target = $region36
    $region35: #{tpu_custom_call.1} parent=5 // pred_region
      // Predicated region
      $region37: #{tpu_custom_call.1} parent=35 // pred_check
        %p203 = pneg %p32
      $region38: #{tpu_custom_call.1} parent=35 // pred_check_branch
        %205 = sbr.rel (%p203) target = $region40
      $region39: #{tpu_custom_call.1} parent=35 // pred_region
        %p206 = scmp.lt.s32.totalorder %s12, 1
        %s207 = scalar_select %p206, %s12, 1
        %s208 = smul.addr %s207, 54
        %s209 = smul.addr %s208, 8
        %s210 = scalar_lea.vmem %s0, %s209
      $region40: #{tpu_custom_call.1} parent=35 // pred_fallthru
        _
    $region36: #{tpu_custom_call.1} parent=5 // pred_fallthru
      _
    %p211 = scmp.le.s32.totalorder 1, %s12
    %p212 = scmp.lt.s32.totalorder %s12, 3
    %p213 = pnand %p211, %p212
    %p214 = pneg %p213
    // Predicated region
    $region41: #{tpu_custom_call.1} parent=5 // pred_check
      _
    $region42: #{tpu_custom_call.1} parent=5 // pred_check_branch
      %216 = sbr.rel (%p213) target = $region44
    $region43: #{tpu_custom_call.1} parent=5 // pred_region
      %s217 = ssub.s32 %s12, 1
      %p218 = scmp.lt.s32.totalorder %s17, 1
      %s219 = scalar_select %p218, %s17, 1
      %s220 = smul.addr %s219, 54
      %s221 = smul.addr %s220, 8
      %s222 = scalar_lea.vmem %s0, %s221
      %p223 = pneg %p38
      %p224 = pneg %p35
      %p225 = pneg %p59
      %p226 = pneg %p56
      %p227 = pneg %p80
      %p228 = pneg %p77
      %p229 = pneg %p101
      %p230 = pneg %p98
      %p231 = pneg %p122
      %p232 = pneg %p119
      %p233 = pneg %p143
      %p234 = pneg %p140
      %p235 = pneg %p169
      %p236 = pneg %p166
      %p237 = scmp.lt.s32.totalorder %s17, 1
      %s238 = scalar_select %p237, %s17, 1
      %s239 = smul.addr %s238, 32
      %s240 = smul.addr %s239, 8
      %s241 = scalar_lea.vmem %s6, %s240
      %p242 = scmp.lt.s32.totalorder %s17, 1
      %s243 = scalar_select %p242, %s17, 1
      %s244 = smul.addr %s243, 54
      %s245 = smul.addr %s244, 8
      %s246 = scalar_lea.vmem %s0, %s245
      %p247 = scmp.lt.s32.totalorder %s17, 1
      %s248 = scalar_select %p247, %s17, 1
      %s249 = smul.addr %s248, 32
      %s250 = smul.addr %s249, 8
      %s251 = scalar_lea.vmem %s6, %s250
      %v252 = vld [vmem:[%s246] sm:$0xff]
      %v253 = vld [vmem:[%s246 + $0x8] sm:$0xff]
      %v254 = vld [vmem:[%s246 + $0x18] sm:$0xff]
      %v255 = vld [vmem:[%s246 + $0x20] sm:$0xff]
      %v256 = vld [vmem:[%s246 + $0x30] sm:$0xff]
      %v257 = vld [vmem:[%s246 + $0x38] sm:$0xff]
      %v258 = vld [vmem:[%s246 + $0x48] sm:$0xff]
      %v259 = vld [vmem:[%s246 + $0x50] sm:$0xff]
      %v260 = vld [vmem:[%s246 + $0x60] sm:$0xff]
      %v261 = vld [vmem:[%s246 + $0x68] sm:$0xff]
      %v262 = vld [vmem:[%s246 + $0x78] sm:$0xff]
      %v263 = vld [vmem:[%s246 + $0x80] sm:$0xff]
      %v264 = vld [vmem:[%s246 + $0x90] sm:$0xff]
      %v265 = vld [vmem:[%s246 + $0x98] sm:$0xff]
      %v266 = vld [vmem:[%s246 + $0xa8] sm:$0xff]
      %v267 = vld [vmem:[%s246 + $0xb0] sm:$0xff]
      %v268 = vld [vmem:[%s246 + $0xc0] sm:$0xff]
      %v269 = vld [vmem:[%s246 + $0xc8] sm:$0xff]
      %v270 = vld [vmem:[%s246 + $0xd8] sm:$0xff]
      %v271 = vld [vmem:[%s246 + $0xe0] sm:$0xff]
      %v272 = vld [vmem:[%s246 + $0xf0] sm:$0xff]
      %v273 = vld [vmem:[%s246 + $0xf8] sm:$0xff]
      %v274 = vld [vmem:[%s246 + $0x108] sm:$0xff]
      %v275 = vld [vmem:[%s246 + $0x110] sm:$0xff]
      %v276 = vld [vmem:[%s246 + $0x120] sm:$0xff]
      %v277 = vld [vmem:[%s246 + $0x128] sm:$0xff]
      %v278 = vld [vmem:[%s246 + $0x138] sm:$0xff]
      %v279 = vld [vmem:[%s246 + $0x140] sm:$0xff]
      %v280 = vld [vmem:[%s246 + $0x150] sm:$0xff]
      %v281 = vld [vmem:[%s246 + $0x158] sm:$0xff]
      %v282 = vld [vmem:[%s246 + $0x168] sm:$0xff]
      %v283 = vld [vmem:[%s246 + $0x170] sm:$0xff]
      %v284 = vld [vmem:[%s246 + $0x1] sm:$0xff]
      %v285 = vld [vmem:[%s246 + $0x9] sm:$0xff]
      %v286 = vld [vmem:[%s246 + $0x19] sm:$0xff]
      %v287 = vld [vmem:[%s246 + $0x21] sm:$0xff]
      %v288 = vld [vmem:[%s246 + $0x31] sm:$0xff]
      %v289 = vld [vmem:[%s246 + $0x39] sm:$0xff]
      %v290 = vld [vmem:[%s246 + $0x49] sm:$0xff]
      %v291 = vld [vmem:[%s246 + $0x51] sm:$0xff]
      %v292 = vld [vmem:[%s246 + $0x61] sm:$0xff]
      %v293 = vld [vmem:[%s246 + $0x69] sm:$0xff]
      %v294 = vld [vmem:[%s246 + $0x79] sm:$0xff]
      %v295 = vld [vmem:[%s246 + $0x81] sm:$0xff]
      %v296 = vld [vmem:[%s246 + $0x91] sm:$0xff]
      %v297 = vld [vmem:[%s246 + $0x99] sm:$0xff]
      %v298 = vld [vmem:[%s246 + $0xa9] sm:$0xff]
      %v299 = vld [vmem:[%s246 + $0xb1] sm:$0xff]
      %v300 = vld [vmem:[%s246 + $0xc1] sm:$0xff]
      %v301 = vld [vmem:[%s246 + $0xc9] sm:$0xff]
      %v302 = vld [vmem:[%s246 + $0xd9] sm:$0xff]
      %v303 = vld [vmem:[%s246 + $0xe1] sm:$0xff]
      %v304 = vld [vmem:[%s246 + $0xf1] sm:$0xff]
      %v305 = vld [vmem:[%s246 + $0xf9] sm:$0xff]
      %v306 = vld [vmem:[%s246 + $0x109] sm:$0xff]
      %v307 = vld [vmem:[%s246 + $0x111] sm:$0xff]
      %v308 = vld [vmem:[%s246 + $0x121] sm:$0xff]
      %v309 = vld [vmem:[%s246 + $0x129] sm:$0xff]
      %v310 = vld [vmem:[%s246 + $0x139] sm:$0xff]
      %v311 = vld [vmem:[%s246 + $0x141] sm:$0xff]
      %v312 = vld [vmem:[%s246 + $0x151] sm:$0xff]
      %v313 = vld [vmem:[%s246 + $0x159] sm:$0xff]
      %v314 = vld [vmem:[%s246 + $0x169] sm:$0xff]
      %v315 = vld [vmem:[%s246 + $0x171] sm:$0xff]
      %v316 = vld [vmem:[%s246 + $0x2] sm:$0xff]
      %v317 = vld [vmem:[%s246 + $0xa] sm:$0xff]
      %v318 = vld [vmem:[%s246 + $0x1a] sm:$0xff]
      %v319 = vld [vmem:[%s246 + $0x22] sm:$0xff]
      %v320 = vld [vmem:[%s246 + $0x32] sm:$0xff]
      %v321 = vld [vmem:[%s246 + $0x3a] sm:$0xff]
      %v322 = vld [vmem:[%s246 + $0x4a] sm:$0xff]
      %v323 = vld [vmem:[%s246 + $0x52] sm:$0xff]
      %v324 = vld [vmem:[%s246 + $0x62] sm:$0xff]
      %v325 = vld [vmem:[%s246 + $0x6a] sm:$0xff]
      %v326 = vld [vmem:[%s246 + $0x7a] sm:$0xff]
      %v327 = vld [vmem:[%s246 + $0x82] sm:$0xff]
      %v328 = vld [vmem:[%s246 + $0x92] sm:$0xff]
      %v329 = vld [vmem:[%s246 + $0x9a] sm:$0xff]
      %v330 = vld [vmem:[%s246 + $0xaa] sm:$0xff]
      %v331 = vld [vmem:[%s246 + $0xb2] sm:$0xff]
      %v332 = vld [vmem:[%s246 + $0xc2] sm:$0xff]
      %v333 = vld [vmem:[%s246 + $0xca] sm:$0xff]
      %v334 = vld [vmem:[%s246 + $0xda] sm:$0xff]
      %v335 = vld [vmem:[%s246 + $0xe2] sm:$0xff]
      %v336 = vld [vmem:[%s246 + $0xf2] sm:$0xff]
      %v337 = vld [vmem:[%s246 + $0xfa] sm:$0xff]
      %v338 = vld [vmem:[%s246 + $0x10a] sm:$0xff]
      %v339 = vld [vmem:[%s246 + $0x112] sm:$0xff]
      %v340 = vld [vmem:[%s246 + $0x122] sm:$0xff]
      %v341 = vld [vmem:[%s246 + $0x12a] sm:$0xff]
      %v342 = vld [vmem:[%s246 + $0x13a] sm:$0xff]
      %v343 = vld [vmem:[%s246 + $0x142] sm:$0xff]
      %v344 = vld [vmem:[%s246 + $0x152] sm:$0xff]
      %v345 = vld [vmem:[%s246 + $0x15a] sm:$0xff]
      %v346 = vld [vmem:[%s246 + $0x16a] sm:$0xff]
      %v347 = vld [vmem:[%s246 + $0x172] sm:$0xff]
      %s348 = scalar_lea.vmem %s246, 24
      %v349 = vld [vmem:[%s348] sm:$0xff]
      %v350 = vld [vmem:[%s348 + $0x8] sm:$0xff]
      %v351 = vld [vmem:[%s348 + $0x18] sm:$0xff]
      %v352 = vld [vmem:[%s348 + $0x20] sm:$0xff]
      %v353 = vld [vmem:[%s348 + $0x30] sm:$0xff]
      %v354 = vld [vmem:[%s348 + $0x38] sm:$0xff]
      %v355 = vld [vmem:[%s348 + $0x48] sm:$0xff]
      %v356 = vld [vmem:[%s348 + $0x50] sm:$0xff]
      %v357 = vld [vmem:[%s348 + $0x60] sm:$0xff]
      %v358 = vld [vmem:[%s348 + $0x68] sm:$0xff]
      %v359 = vld [vmem:[%s348 + $0x78] sm:$0xff]
      %v360 = vld [vmem:[%s348 + $0x80] sm:$0xff]
      %v361 = vld [vmem:[%s348 + $0x90] sm:$0xff]
      %v362 = vld [vmem:[%s348 + $0x98] sm:$0xff]
      %v363 = vld [vmem:[%s348 + $0xa8] sm:$0xff]
      %v364 = vld [vmem:[%s348 + $0xb0] sm:$0xff]
      %v365 = vld [vmem:[%s348 + $0xc0] sm:$0xff]
      %v366 = vld [vmem:[%s348 + $0xc8] sm:$0xff]
      %v367 = vld [vmem:[%s348 + $0xd8] sm:$0xff]
      %v368 = vld [vmem:[%s348 + $0xe0] sm:$0xff]
      %v369 = vld [vmem:[%s348 + $0xf0] sm:$0xff]
      %v370 = vld [vmem:[%s348 + $0xf8] sm:$0xff]
      %v371 = vld [vmem:[%s348 + $0x108] sm:$0xff]
      %v372 = vld [vmem:[%s348 + $0x110] sm:$0xff]
      %v373 = vld [vmem:[%s348 + $0x120] sm:$0xff]
      %v374 = vld [vmem:[%s348 + $0x128] sm:$0xff]
      %v375 = vld [vmem:[%s348 + $0x138] sm:$0xff]
      %v376 = vld [vmem:[%s348 + $0x140] sm:$0xff]
      %v377 = vld [vmem:[%s348 + $0x150] sm:$0xff]
      %v378 = vld [vmem:[%s348 + $0x158] sm:$0xff]
      %v379 = vld [vmem:[%s348 + $0x168] sm:$0xff]
      %v380 = vld [vmem:[%s348 + $0x170] sm:$0xff]
      %v381 = vld [vmem:[%s348 + $0x1] sm:$0xff]
      %v382 = vld [vmem:[%s348 + $0x9] sm:$0xff]
      %v383 = vld [vmem:[%s348 + $0x19] sm:$0xff]
      %v384 = vld [vmem:[%s348 + $0x21] sm:$0xff]
      %v385 = vld [vmem:[%s348 + $0x31] sm:$0xff]
      %v386 = vld [vmem:[%s348 + $0x39] sm:$0xff]
      %v387 = vld [vmem:[%s348 + $0x49] sm:$0xff]
      %v388 = vld [vmem:[%s348 + $0x51] sm:$0xff]
      %v389 = vld [vmem:[%s348 + $0x61] sm:$0xff]
      %v390 = vld [vmem:[%s348 + $0x69] sm:$0xff]
      %v391 = vld [vmem:[%s348 + $0x79] sm:$0xff]
      %v392 = vld [vmem:[%s348 + $0x81] sm:$0xff]
      %v393 = vld [vmem:[%s348 + $0x91] sm:$0xff]
      %v394 = vld [vmem:[%s348 + $0x99] sm:$0xff]
      %v395 = vld [vmem:[%s348 + $0xa9] sm:$0xff]
      %v396 = vld [vmem:[%s348 + $0xb1] sm:$0xff]
      %v397 = vld [vmem:[%s348 + $0xc1] sm:$0xff]
      %v398 = vld [vmem:[%s348 + $0xc9] sm:$0xff]
      %v399 = vld [vmem:[%s348 + $0xd9] sm:$0xff]
      %v400 = vld [vmem:[%s348 + $0xe1] sm:$0xff]
      %v401 = vld [vmem:[%s348 + $0xf1] sm:$0xff]
      %v402 = vld [vmem:[%s348 + $0xf9] sm:$0xff]
      %v403 = vld [vmem:[%s348 + $0x109] sm:$0xff]
      %v404 = vld [vmem:[%s348 + $0x111] sm:$0xff]
      %v405 = vld [vmem:[%s348 + $0x121] sm:$0xff]
      %v406 = vld [vmem:[%s348 + $0x129] sm:$0xff]
      %v407 = vld [vmem:[%s348 + $0x139] sm:$0xff]
      %v408 = vld [vmem:[%s348 + $0x141] sm:$0xff]
      %v409 = vld [vmem:[%s348 + $0x151] sm:$0xff]
      %v410 = vld [vmem:[%s348 + $0x159] sm:$0xff]
      %v411 = vld [vmem:[%s348 + $0x169] sm:$0xff]
      %v412 = vld [vmem:[%s348 + $0x171] sm:$0xff]
      %v413 = vld [vmem:[%s348 + $0x2] sm:$0xff]
      %v414 = vld [vmem:[%s348 + $0xa] sm:$0xff]
      %v415 = vld [vmem:[%s348 + $0x1a] sm:$0xff]
      %v416 = vld [vmem:[%s348 + $0x22] sm:$0xff]
      %v417 = vld [vmem:[%s348 + $0x32] sm:$0xff]
      %v418 = vld [vmem:[%s348 + $0x3a] sm:$0xff]
      %v419 = vld [vmem:[%s348 + $0x4a] sm:$0xff]
      %v420 = vld [vmem:[%s348 + $0x52] sm:$0xff]
      %v421 = vld [vmem:[%s348 + $0x62] sm:$0xff]
      %v422 = vld [vmem:[%s348 + $0x6a] sm:$0xff]
      %v423 = vld [vmem:[%s348 + $0x7a] sm:$0xff]
      %v424 = vld [vmem:[%s348 + $0x82] sm:$0xff]
      %v425 = vld [vmem:[%s348 + $0x92] sm:$0xff]
      %v426 = vld [vmem:[%s348 + $0x9a] sm:$0xff]
      %v427 = vld [vmem:[%s348 + $0xaa] sm:$0xff]
      %v428 = vld [vmem:[%s348 + $0xb2] sm:$0xff]
      %v429 = vld [vmem:[%s348 + $0xc2] sm:$0xff]
      %v430 = vld [vmem:[%s348 + $0xca] sm:$0xff]
      %v431 = vld [vmem:[%s348 + $0xda] sm:$0xff]
      %v432 = vld [vmem:[%s348 + $0xe2] sm:$0xff]
      %v433 = vld [vmem:[%s348 + $0xf2] sm:$0xff]
      %v434 = vld [vmem:[%s348 + $0xfa] sm:$0xff]
      %v435 = vld [vmem:[%s348 + $0x10a] sm:$0xff]
      %v436 = vld [vmem:[%s348 + $0x112] sm:$0xff]
      %v437 = vld [vmem:[%s348 + $0x122] sm:$0xff]
      %v438 = vld [vmem:[%s348 + $0x12a] sm:$0xff]
      %v439 = vld [vmem:[%s348 + $0x13a] sm:$0xff]
      %v440 = vld [vmem:[%s348 + $0x142] sm:$0xff]
      %v441 = vld [vmem:[%s348 + $0x152] sm:$0xff]
      %v442 = vld [vmem:[%s348 + $0x15a] sm:$0xff]
      %v443 = vld [vmem:[%s348 + $0x16a] sm:$0xff]
      %v444 = vld [vmem:[%s348 + $0x172] sm:$0xff]
      %s445 = scalar_lea.vmem %s246, 48
      %v446 = vld [vmem:[%s445] sm:$0xff]
      %v447 = vld [vmem:[%s445 + $0x8] sm:$0xff]
      %v448 = vld [vmem:[%s445 + $0x18] sm:$0xff]
      %v449 = vld [vmem:[%s445 + $0x20] sm:$0xff]
      %v450 = vld [vmem:[%s445 + $0x30] sm:$0xff]
      %v451 = vld [vmem:[%s445 + $0x38] sm:$0xff]
      %v452 = vld [vmem:[%s445 + $0x48] sm:$0xff]
      %v453 = vld [vmem:[%s445 + $0x50] sm:$0xff]
      %v454 = vld [vmem:[%s445 + $0x60] sm:$0xff]
      %v455 = vld [vmem:[%s445 + $0x68] sm:$0xff]
      %v456 = vld [vmem:[%s445 + $0x78] sm:$0xff]
      %v457 = vld [vmem:[%s445 + $0x80] sm:$0xff]
      %v458 = vld [vmem:[%s445 + $0x90] sm:$0xff]
      %v459 = vld [vmem:[%s445 + $0x98] sm:$0xff]
      %v460 = vld [vmem:[%s445 + $0xa8] sm:$0xff]
      %v461 = vld [vmem:[%s445 + $0xb0] sm:$0xff]
      %v462 = vld [vmem:[%s445 + $0xc0] sm:$0xff]
      %v463 = vld [vmem:[%s445 + $0xc8] sm:$0xff]
      %v464 = vld [vmem:[%s445 + $0xd8] sm:$0xff]
      %v465 = vld [vmem:[%s445 + $0xe0] sm:$0xff]
      %v466 = vld [vmem:[%s445 + $0xf0] sm:$0xff]
      %v467 = vld [vmem:[%s445 + $0xf8] sm:$0xff]
      %v468 = vld [vmem:[%s445 + $0x108] sm:$0xff]
      %v469 = vld [vmem:[%s445 + $0x110] sm:$0xff]
      %v470 = vld [vmem:[%s445 + $0x120] sm:$0xff]
      %v471 = vld [vmem:[%s445 + $0x128] sm:$0xff]
      %v472 = vld [vmem:[%s445 + $0x138] sm:$0xff]
      %v473 = vld [vmem:[%s445 + $0x140] sm:$0xff]
      %v474 = vld [vmem:[%s445 + $0x150] sm:$0xff]
      %v475 = vld [vmem:[%s445 + $0x158] sm:$0xff]
      %v476 = vld [vmem:[%s445 + $0x168] sm:$0xff]
      %v477 = vld [vmem:[%s445 + $0x170] sm:$0xff]
      %v478 = vld [vmem:[%s445 + $0x1] sm:$0xff]
      %v479 = vld [vmem:[%s445 + $0x9] sm:$0xff]
      %v480 = vld [vmem:[%s445 + $0x19] sm:$0xff]
      %v481 = vld [vmem:[%s445 + $0x21] sm:$0xff]
      %v482 = vld [vmem:[%s445 + $0x31] sm:$0xff]
      %v483 = vld [vmem:[%s445 + $0x39] sm:$0xff]
      %v484 = vld [vmem:[%s445 + $0x49] sm:$0xff]
      %v485 = vld [vmem:[%s445 + $0x51] sm:$0xff]
      %v486 = vld [vmem:[%s445 + $0x61] sm:$0xff]
      %v487 = vld [vmem:[%s445 + $0x69] sm:$0xff]
      %v488 = vld [vmem:[%s445 + $0x79] sm:$0xff]
      %v489 = vld [vmem:[%s445 + $0x81] sm:$0xff]
      %v490 = vld [vmem:[%s445 + $0x91] sm:$0xff]
      %v491 = vld [vmem:[%s445 + $0x99] sm:$0xff]
      %v492 = vld [vmem:[%s445 + $0xa9] sm:$0xff]
      %v493 = vld [vmem:[%s445 + $0xb1] sm:$0xff]
      %v494 = vld [vmem:[%s445 + $0xc1] sm:$0xff]
      %v495 = vld [vmem:[%s445 + $0xc9] sm:$0xff]
      %v496 = vld [vmem:[%s445 + $0xd9] sm:$0xff]
      %v497 = vld [vmem:[%s445 + $0xe1] sm:$0xff]
      %v498 = vld [vmem:[%s445 + $0xf1] sm:$0xff]
      %v499 = vld [vmem:[%s445 + $0xf9] sm:$0xff]
      %v500 = vld [vmem:[%s445 + $0x109] sm:$0xff]
      %v501 = vld [vmem:[%s445 + $0x111] sm:$0xff]
      %v502 = vld [vmem:[%s445 + $0x121] sm:$0xff]
      %v503 = vld [vmem:[%s445 + $0x129] sm:$0xff]
      %v504 = vld [vmem:[%s445 + $0x139] sm:$0xff]
      %v505 = vld [vmem:[%s445 + $0x141] sm:$0xff]
      %v506 = vld [vmem:[%s445 + $0x151] sm:$0xff]
      %v507 = vld [vmem:[%s445 + $0x159] sm:$0xff]
      %v508 = vld [vmem:[%s445 + $0x169] sm:$0xff]
      %v509 = vld [vmem:[%s445 + $0x171] sm:$0xff]
      %v510 = vld [vmem:[%s445 + $0x2] sm:$0xff]
      %v511 = vld [vmem:[%s445 + $0xa] sm:$0xff]
      %v512 = vld [vmem:[%s445 + $0x1a] sm:$0xff]
      %v513 = vld [vmem:[%s445 + $0x22] sm:$0xff]
      %v514 = vld [vmem:[%s445 + $0x32] sm:$0xff]
      %v515 = vld [vmem:[%s445 + $0x3a] sm:$0xff]
      %v516 = vld [vmem:[%s445 + $0x4a] sm:$0xff]
      %v517 = vld [vmem:[%s445 + $0x52] sm:$0xff]
      %v518 = vld [vmem:[%s445 + $0x62] sm:$0xff]
      %v519 = vld [vmem:[%s445 + $0x6a] sm:$0xff]
      %v520 = vld [vmem:[%s445 + $0x7a] sm:$0xff]
      %v521 = vld [vmem:[%s445 + $0x82] sm:$0xff]
      %v522 = vld [vmem:[%s445 + $0x92] sm:$0xff]
      %v523 = vld [vmem:[%s445 + $0x9a] sm:$0xff]
      %v524 = vld [vmem:[%s445 + $0xaa] sm:$0xff]
      %v525 = vld [vmem:[%s445 + $0xb2] sm:$0xff]
      %v526 = vld [vmem:[%s445 + $0xc2] sm:$0xff]
      %v527 = vld [vmem:[%s445 + $0xca] sm:$0xff]
      %v528 = vld [vmem:[%s445 + $0xda] sm:$0xff]
      %v529 = vld [vmem:[%s445 + $0xe2] sm:$0xff]
      %v530 = vld [vmem:[%s445 + $0xf2] sm:$0xff]
      %v531 = vld [vmem:[%s445 + $0xfa] sm:$0xff]
      %v532 = vld [vmem:[%s445 + $0x10a] sm:$0xff]
      %v533 = vld [vmem:[%s445 + $0x112] sm:$0xff]
      %v534 = vld [vmem:[%s445 + $0x122] sm:$0xff]
      %v535 = vld [vmem:[%s445 + $0x12a] sm:$0xff]
      %v536 = vld [vmem:[%s445 + $0x13a] sm:$0xff]
      %v537 = vld [vmem:[%s445 + $0x142] sm:$0xff]
      %v538 = vld [vmem:[%s445 + $0x152] sm:$0xff]
      %v539 = vld [vmem:[%s445 + $0x15a] sm:$0xff]
      %v540 = vld [vmem:[%s445 + $0x16a] sm:$0xff]
      %v541 = vld [vmem:[%s445 + $0x172] sm:$0xff]
      %574 = vrot.lane.b32.xlu0 %v284, 4
      %v575 = vpop.permute.xlu0 %574
      %576 = vrot.lane.b32.xlu0 %v285, 4
      %v577 = vpop.permute.xlu0 %576
      %578 = vrot.lane.b32.xlu0 %v286, 4
      %v579 = vpop.permute.xlu0 %578
      %580 = vrot.lane.b32.xlu0 %v287, 4
      %v581 = vpop.permute.xlu0 %580
      %582 = vrot.lane.b32.xlu0 %v288, 4
      %v583 = vpop.permute.xlu0 %582
      %584 = vrot.lane.b32.xlu0 %v289, 4
      %v585 = vpop.permute.xlu0 %584
      %586 = vrot.lane.b32.xlu0 %v290, 4
      %v587 = vpop.permute.xlu0 %586
      %588 = vrot.lane.b32.xlu0 %v291, 4
      %v589 = vpop.permute.xlu0 %588
      %590 = vrot.lane.b32.xlu0 %v292, 4
      %v591 = vpop.permute.xlu0 %590
      %592 = vrot.lane.b32.xlu0 %v293, 4
      %v593 = vpop.permute.xlu0 %592
      %594 = vrot.lane.b32.xlu0 %v294, 4
      %v595 = vpop.permute.xlu0 %594
      %596 = vrot.lane.b32.xlu0 %v295, 4
      %v597 = vpop.permute.xlu0 %596
      %598 = vrot.lane.b32.xlu0 %v296, 4
      %v599 = vpop.permute.xlu0 %598
      %600 = vrot.lane.b32.xlu0 %v297, 4
      %v601 = vpop.permute.xlu0 %600
      %602 = vrot.lane.b32.xlu0 %v298, 4
      %v603 = vpop.permute.xlu0 %602
      %604 = vrot.lane.b32.xlu0 %v299, 4
      %v605 = vpop.permute.xlu0 %604
      %606 = vrot.lane.b32.xlu0 %v300, 4
      %v607 = vpop.permute.xlu0 %606
      %608 = vrot.lane.b32.xlu0 %v301, 4
      %v609 = vpop.permute.xlu0 %608
      %610 = vrot.lane.b32.xlu0 %v302, 4
      %v611 = vpop.permute.xlu0 %610
      %612 = vrot.lane.b32.xlu0 %v303, 4
      %v613 = vpop.permute.xlu0 %612
      %614 = vrot.lane.b32.xlu0 %v304, 4
      %v615 = vpop.permute.xlu0 %614
      %616 = vrot.lane.b32.xlu0 %v305, 4
      %v617 = vpop.permute.xlu0 %616
      %618 = vrot.lane.b32.xlu0 %v306, 4
      %v619 = vpop.permute.xlu0 %618
      %620 = vrot.lane.b32.xlu0 %v307, 4
      %v621 = vpop.permute.xlu0 %620
      %622 = vrot.lane.b32.xlu0 %v308, 4
      %v623 = vpop.permute.xlu0 %622
      %624 = vrot.lane.b32.xlu0 %v309, 4
      %v625 = vpop.permute.xlu0 %624
      %626 = vrot.lane.b32.xlu0 %v310, 4
      %v627 = vpop.permute.xlu0 %626
      %628 = vrot.lane.b32.xlu0 %v311, 4
      %v629 = vpop.permute.xlu0 %628
      %630 = vrot.lane.b32.xlu0 %v312, 4
      %v631 = vpop.permute.xlu0 %630
      %632 = vrot.lane.b32.xlu0 %v313, 4
      %v633 = vpop.permute.xlu0 %632
      %634 = vrot.lane.b32.xlu0 %v314, 4
      %v635 = vpop.permute.xlu0 %634
      %636 = vrot.lane.b32.xlu0 %v315, 4
      %v637 = vpop.permute.xlu0 %636
      %702 = vrot.lane.b32.xlu0 %v316, 8
      %v703 = vpop.permute.xlu0 %702
      %704 = vrot.lane.b32.xlu0 %v317, 8
      %v705 = vpop.permute.xlu0 %704
      %706 = vrot.lane.b32.xlu0 %v318, 8
      %v707 = vpop.permute.xlu0 %706
      %708 = vrot.lane.b32.xlu0 %v319, 8
      %v709 = vpop.permute.xlu0 %708
      %710 = vrot.lane.b32.xlu0 %v320, 8
      %v711 = vpop.permute.xlu0 %710
      %712 = vrot.lane.b32.xlu0 %v321, 8
      %v713 = vpop.permute.xlu0 %712
      %714 = vrot.lane.b32.xlu0 %v322, 8
      %v715 = vpop.permute.xlu0 %714
      %716 = vrot.lane.b32.xlu0 %v323, 8
      %v717 = vpop.permute.xlu0 %716
      %718 = vrot.lane.b32.xlu0 %v324, 8
      %v719 = vpop.permute.xlu0 %718
      %720 = vrot.lane.b32.xlu0 %v325, 8
      %v721 = vpop.permute.xlu0 %720
      %722 = vrot.lane.b32.xlu0 %v326, 8
      %v723 = vpop.permute.xlu0 %722
      %724 = vrot.lane.b32.xlu0 %v327, 8
      %v725 = vpop.permute.xlu0 %724
      %726 = vrot.lane.b32.xlu0 %v328, 8
      %v727 = vpop.permute.xlu0 %726
      %728 = vrot.lane.b32.xlu0 %v329, 8
      %v729 = vpop.permute.xlu0 %728
      %730 = vrot.lane.b32.xlu0 %v330, 8
      %v731 = vpop.permute.xlu0 %730
      %732 = vrot.lane.b32.xlu0 %v331, 8
      %v733 = vpop.permute.xlu0 %732
      %734 = vrot.lane.b32.xlu0 %v332, 8
      %v735 = vpop.permute.xlu0 %734
      %736 = vrot.lane.b32.xlu0 %v333, 8
      %v737 = vpop.permute.xlu0 %736
      %738 = vrot.lane.b32.xlu0 %v334, 8
      %v739 = vpop.permute.xlu0 %738
      %740 = vrot.lane.b32.xlu0 %v335, 8
      %v741 = vpop.permute.xlu0 %740
      %742 = vrot.lane.b32.xlu0 %v336, 8
      %v743 = vpop.permute.xlu0 %742
      %744 = vrot.lane.b32.xlu0 %v337, 8
      %v745 = vpop.permute.xlu0 %744
      %746 = vrot.lane.b32.xlu0 %v338, 8
      %v747 = vpop.permute.xlu0 %746
      %748 = vrot.lane.b32.xlu0 %v339, 8
      %v749 = vpop.permute.xlu0 %748
      %750 = vrot.lane.b32.xlu0 %v340, 8
      %v751 = vpop.permute.xlu0 %750
      %752 = vrot.lane.b32.xlu0 %v341, 8
      %v753 = vpop.permute.xlu0 %752
      %754 = vrot.lane.b32.xlu0 %v342, 8
      %v755 = vpop.permute.xlu0 %754
      %756 = vrot.lane.b32.xlu0 %v343, 8
      %v757 = vpop.permute.xlu0 %756
      %758 = vrot.lane.b32.xlu0 %v344, 8
      %v759 = vpop.permute.xlu0 %758
      %760 = vrot.lane.b32.xlu0 %v345, 8
      %v761 = vpop.permute.xlu0 %760
      %762 = vrot.lane.b32.xlu0 %v346, 8
      %v763 = vpop.permute.xlu0 %762
      %764 = vrot.lane.b32.xlu0 %v347, 8
      %v765 = vpop.permute.xlu0 %764
      %830 = vrot.lane.b32.xlu0 %v349, 12
      %v831 = vpop.permute.xlu0 %830
      %832 = vrot.lane.b32.xlu0 %v350, 12
      %v833 = vpop.permute.xlu0 %832
      %834 = vrot.lane.b32.xlu0 %v351, 12
      %v835 = vpop.permute.xlu0 %834
      %836 = vrot.lane.b32.xlu0 %v352, 12
      %v837 = vpop.permute.xlu0 %836
      %838 = vrot.lane.b32.xlu0 %v353, 12
      %v839 = vpop.permute.xlu0 %838
      %840 = vrot.lane.b32.xlu0 %v354, 12
      %v841 = vpop.permute.xlu0 %840
      %842 = vrot.lane.b32.xlu0 %v355, 12
      %v843 = vpop.permute.xlu0 %842
      %844 = vrot.lane.b32.xlu0 %v356, 12
      %v845 = vpop.permute.xlu0 %844
      %846 = vrot.lane.b32.xlu0 %v357, 12
      %v847 = vpop.permute.xlu0 %846
      %848 = vrot.lane.b32.xlu0 %v358, 12
      %v849 = vpop.permute.xlu0 %848
      %850 = vrot.lane.b32.xlu0 %v359, 12
      %v851 = vpop.permute.xlu0 %850
      %852 = vrot.lane.b32.xlu0 %v360, 12
      %v853 = vpop.permute.xlu0 %852
      %854 = vrot.lane.b32.xlu0 %v361, 12
      %v855 = vpop.permute.xlu0 %854
      %856 = vrot.lane.b32.xlu0 %v362, 12
      %v857 = vpop.permute.xlu0 %856
      %858 = vrot.lane.b32.xlu0 %v363, 12
      %v859 = vpop.permute.xlu0 %858
      %860 = vrot.lane.b32.xlu0 %v364, 12
      %v861 = vpop.permute.xlu0 %860
      %862 = vrot.lane.b32.xlu0 %v365, 12
      %v863 = vpop.permute.xlu0 %862
      %864 = vrot.lane.b32.xlu0 %v366, 12
      %v865 = vpop.permute.xlu0 %864
      %866 = vrot.lane.b32.xlu0 %v367, 12
      %v867 = vpop.permute.xlu0 %866
      %868 = vrot.lane.b32.xlu0 %v368, 12
      %v869 = vpop.permute.xlu0 %868
      %870 = vrot.lane.b32.xlu0 %v369, 12
      %v871 = vpop.permute.xlu0 %870
      %872 = vrot.lane.b32.xlu0 %v370, 12
      %v873 = vpop.permute.xlu0 %872
      %874 = vrot.lane.b32.xlu0 %v371, 12
      %v875 = vpop.permute.xlu0 %874
      %876 = vrot.lane.b32.xlu0 %v372, 12
      %v877 = vpop.permute.xlu0 %876
      %878 = vrot.lane.b32.xlu0 %v373, 12
      %v879 = vpop.permute.xlu0 %878
      %880 = vrot.lane.b32.xlu0 %v374, 12
      %v881 = vpop.permute.xlu0 %880
      %882 = vrot.lane.b32.xlu0 %v375, 12
      %v883 = vpop.permute.xlu0 %882
      %884 = vrot.lane.b32.xlu0 %v376, 12
      %v885 = vpop.permute.xlu0 %884
      %886 = vrot.lane.b32.xlu0 %v377, 12
      %v887 = vpop.permute.xlu0 %886
      %888 = vrot.lane.b32.xlu0 %v378, 12
      %v889 = vpop.permute.xlu0 %888
      %890 = vrot.lane.b32.xlu0 %v379, 12
      %v891 = vpop.permute.xlu0 %890
      %892 = vrot.lane.b32.xlu0 %v380, 12
      %v893 = vpop.permute.xlu0 %892
      %958 = vrot.lane.b32.xlu0 %v381, 16
      %v959 = vpop.permute.xlu0 %958
      %960 = vrot.lane.b32.xlu0 %v382, 16
      %v961 = vpop.permute.xlu0 %960
      %962 = vrot.lane.b32.xlu0 %v383, 16
      %v963 = vpop.permute.xlu0 %962
      %964 = vrot.lane.b32.xlu0 %v384, 16
      %v965 = vpop.permute.xlu0 %964
      %966 = vrot.lane.b32.xlu0 %v385, 16
      %v967 = vpop.permute.xlu0 %966
      %968 = vrot.lane.b32.xlu0 %v386, 16
      %v969 = vpop.permute.xlu0 %968
      %970 = vrot.lane.b32.xlu0 %v387, 16
      %v971 = vpop.permute.xlu0 %970
      %972 = vrot.lane.b32.xlu0 %v388, 16
      %v973 = vpop.permute.xlu0 %972
      %974 = vrot.lane.b32.xlu0 %v389, 16
      %v975 = vpop.permute.xlu0 %974
      %976 = vrot.lane.b32.xlu0 %v390, 16
      %v977 = vpop.permute.xlu0 %976
      %978 = vrot.lane.b32.xlu0 %v391, 16
      %v979 = vpop.permute.xlu0 %978
      %980 = vrot.lane.b32.xlu0 %v392, 16
      %v981 = vpop.permute.xlu0 %980
      %982 = vrot.lane.b32.xlu0 %v393, 16
      %v983 = vpop.permute.xlu0 %982
      %984 = vrot.lane.b32.xlu0 %v394, 16
      %v985 = vpop.permute.xlu0 %984
      %986 = vrot.lane.b32.xlu0 %v395, 16
      %v987 = vpop.permute.xlu0 %986
      %988 = vrot.lane.b32.xlu0 %v396, 16
      %v989 = vpop.permute.xlu0 %988
      %990 = vrot.lane.b32.xlu0 %v397, 16
      %v991 = vpop.permute.xlu0 %990
      %992 = vrot.lane.b32.xlu0 %v398, 16
      %v993 = vpop.permute.xlu0 %992
      %994 = vrot.lane.b32.xlu0 %v399, 16
      %v995 = vpop.permute.xlu0 %994
      %996 = vrot.lane.b32.xlu0 %v400, 16
      %v997 = vpop.permute.xlu0 %996
      %998 = vrot.lane.b32.xlu0 %v401, 16
      %v999 = vpop.permute.xlu0 %998
      %1000 = vrot.lane.b32.xlu0 %v402, 16
      %v1001 = vpop.permute.xlu0 %1000
      %1002 = vrot.lane.b32.xlu0 %v403, 16
      %v1003 = vpop.permute.xlu0 %1002
      %1004 = vrot.lane.b32.xlu0 %v404, 16
      %v1005 = vpop.permute.xlu0 %1004
      %1006 = vrot.lane.b32.xlu0 %v405, 16
      %v1007 = vpop.permute.xlu0 %1006
      %1008 = vrot.lane.b32.xlu0 %v406, 16
      %v1009 = vpop.permute.xlu0 %1008
      %1010 = vrot.lane.b32.xlu0 %v407, 16
      %v1011 = vpop.permute.xlu0 %1010
      %1012 = vrot.lane.b32.xlu0 %v408, 16
      %v1013 = vpop.permute.xlu0 %1012
      %1014 = vrot.lane.b32.xlu0 %v409, 16
      %v1015 = vpop.permute.xlu0 %1014
      %1016 = vrot.lane.b32.xlu0 %v410, 16
      %v1017 = vpop.permute.xlu0 %1016
      %1018 = vrot.lane.b32.xlu0 %v411, 16
      %v1019 = vpop.permute.xlu0 %1018
      %1020 = vrot.lane.b32.xlu0 %v412, 16
      %v1021 = vpop.permute.xlu0 %1020
      %1086 = vrot.lane.b32.xlu0 %v413, 20
      %v1087 = vpop.permute.xlu0 %1086
      %1088 = vrot.lane.b32.xlu0 %v414, 20
      %v1089 = vpop.permute.xlu0 %1088
      %1090 = vrot.lane.b32.xlu0 %v415, 20
      %v1091 = vpop.permute.xlu0 %1090
      %1092 = vrot.lane.b32.xlu0 %v416, 20
      %v1093 = vpop.permute.xlu0 %1092
      %1094 = vrot.lane.b32.xlu0 %v417, 20
      %v1095 = vpop.permute.xlu0 %1094
      %1096 = vrot.lane.b32.xlu0 %v418, 20
      %v1097 = vpop.permute.xlu0 %1096
      %1098 = vrot.lane.b32.xlu0 %v419, 20
      %v1099 = vpop.permute.xlu0 %1098
      %1100 = vrot.lane.b32.xlu0 %v420, 20
      %v1101 = vpop.permute.xlu0 %1100
      %1102 = vrot.lane.b32.xlu0 %v421, 20
      %v1103 = vpop.permute.xlu0 %1102
      %1104 = vrot.lane.b32.xlu0 %v422, 20
      %v1105 = vpop.permute.xlu0 %1104
      %1106 = vrot.lane.b32.xlu0 %v423, 20
      %v1107 = vpop.permute.xlu0 %1106
      %1108 = vrot.lane.b32.xlu0 %v424, 20
      %v1109 = vpop.permute.xlu0 %1108
      %1110 = vrot.lane.b32.xlu0 %v425, 20
      %v1111 = vpop.permute.xlu0 %1110
      %1112 = vrot.lane.b32.xlu0 %v426, 20
      %v1113 = vpop.permute.xlu0 %1112
      %1114 = vrot.lane.b32.xlu0 %v427, 20
      %v1115 = vpop.permute.xlu0 %1114
      %1116 = vrot.lane.b32.xlu0 %v428, 20
      %v1117 = vpop.permute.xlu0 %1116
      %1118 = vrot.lane.b32.xlu0 %v429, 20
      %v1119 = vpop.permute.xlu0 %1118
      %1120 = vrot.lane.b32.xlu0 %v430, 20
      %v1121 = vpop.permute.xlu0 %1120
      %1122 = vrot.lane.b32.xlu0 %v431, 20
      %v1123 = vpop.permute.xlu0 %1122
      %1124 = vrot.lane.b32.xlu0 %v432, 20
      %v1125 = vpop.permute.xlu0 %1124
      %1126 = vrot.lane.b32.xlu0 %v433, 20
      %v1127 = vpop.permute.xlu0 %1126
      %1128 = vrot.lane.b32.xlu0 %v434, 20
      %v1129 = vpop.permute.xlu0 %1128
      %1130 = vrot.lane.b32.xlu0 %v435, 20
      %v1131 = vpop.permute.xlu0 %1130
      %1132 = vrot.lane.b32.xlu0 %v436, 20
      %v1133 = vpop.permute.xlu0 %1132
      %1134 = vrot.lane.b32.xlu0 %v437, 20
      %v1135 = vpop.permute.xlu0 %1134
      %1136 = vrot.lane.b32.xlu0 %v438, 20
      %v1137 = vpop.permute.xlu0 %1136
      %1138 = vrot.lane.b32.xlu0 %v439, 20
      %v1139 = vpop.permute.xlu0 %1138
      %1140 = vrot.lane.b32.xlu0 %v440, 20
      %v1141 = vpop.permute.xlu0 %1140
      %1142 = vrot.lane.b32.xlu0 %v441, 20
      %v1143 = vpop.permute.xlu0 %1142
      %1144 = vrot.lane.b32.xlu0 %v442, 20
      %v1145 = vpop.permute.xlu0 %1144
      %1146 = vrot.lane.b32.xlu0 %v443, 20
      %v1147 = vpop.permute.xlu0 %1146
      %1148 = vrot.lane.b32.xlu0 %v444, 20
      %v1149 = vpop.permute.xlu0 %1148
      %1214 = vrot.lane.b32.xlu0 %v446, 24
      %v1215 = vpop.permute.xlu0 %1214
      %1216 = vrot.lane.b32.xlu0 %v447, 24
      %v1217 = vpop.permute.xlu0 %1216
      %1218 = vrot.lane.b32.xlu0 %v448, 24
      %v1219 = vpop.permute.xlu0 %1218
      %1220 = vrot.lane.b32.xlu0 %v449, 24
      %v1221 = vpop.permute.xlu0 %1220
      %1222 = vrot.lane.b32.xlu0 %v450, 24
      %v1223 = vpop.permute.xlu0 %1222
      %1224 = vrot.lane.b32.xlu0 %v451, 24
      %v1225 = vpop.permute.xlu0 %1224
      %1226 = vrot.lane.b32.xlu0 %v452, 24
      %v1227 = vpop.permute.xlu0 %1226
      %1228 = vrot.lane.b32.xlu0 %v453, 24
      %v1229 = vpop.permute.xlu0 %1228
      %1230 = vrot.lane.b32.xlu0 %v454, 24
      %v1231 = vpop.permute.xlu0 %1230
      %1232 = vrot.lane.b32.xlu0 %v455, 24
      %v1233 = vpop.permute.xlu0 %1232
      %1234 = vrot.lane.b32.xlu0 %v456, 24
      %v1235 = vpop.permute.xlu0 %1234
      %1236 = vrot.lane.b32.xlu0 %v457, 24
      %v1237 = vpop.permute.xlu0 %1236
      %1238 = vrot.lane.b32.xlu0 %v458, 24
      %v1239 = vpop.permute.xlu0 %1238
      %1240 = vrot.lane.b32.xlu0 %v459, 24
      %v1241 = vpop.permute.xlu0 %1240
      %1242 = vrot.lane.b32.xlu0 %v460, 24
      %v1243 = vpop.permute.xlu0 %1242
      %1244 = vrot.lane.b32.xlu0 %v461, 24
      %v1245 = vpop.permute.xlu0 %1244
      %1246 = vrot.lane.b32.xlu0 %v462, 24
      %v1247 = vpop.permute.xlu0 %1246
      %1248 = vrot.lane.b32.xlu0 %v463, 24
      %v1249 = vpop.permute.xlu0 %1248
      %1250 = vrot.lane.b32.xlu0 %v464, 24
      %v1251 = vpop.permute.xlu0 %1250
      %1252 = vrot.lane.b32.xlu0 %v465, 24
      %v1253 = vpop.permute.xlu0 %1252
      %1254 = vrot.lane.b32.xlu0 %v466, 24
      %v1255 = vpop.permute.xlu0 %1254
      %1256 = vrot.lane.b32.xlu0 %v467, 24
      %v1257 = vpop.permute.xlu0 %1256
      %1258 = vrot.lane.b32.xlu0 %v468, 24
      %v1259 = vpop.permute.xlu0 %1258
      %1260 = vrot.lane.b32.xlu0 %v469, 24
      %v1261 = vpop.permute.xlu0 %1260
      %1262 = vrot.lane.b32.xlu0 %v470, 24
      %v1263 = vpop.permute.xlu0 %1262
      %1264 = vrot.lane.b32.xlu0 %v471, 24
      %v1265 = vpop.permute.xlu0 %1264
      %1266 = vrot.lane.b32.xlu0 %v472, 24
      %v1267 = vpop.permute.xlu0 %1266
      %1268 = vrot.lane.b32.xlu0 %v473, 24
      %v1269 = vpop.permute.xlu0 %1268
      %1270 = vrot.lane.b32.xlu0 %v474, 24
      %v1271 = vpop.permute.xlu0 %1270
      %1272 = vrot.lane.b32.xlu0 %v475, 24
      %v1273 = vpop.permute.xlu0 %1272
      %1274 = vrot.lane.b32.xlu0 %v476, 24
      %v1275 = vpop.permute.xlu0 %1274
      %1276 = vrot.lane.b32.xlu0 %v477, 24
      %v1277 = vpop.permute.xlu0 %1276
      %1342 = vrot.lane.b32.xlu0 %v478, 28
      %v1343 = vpop.permute.xlu0 %1342
      %1344 = vrot.lane.b32.xlu0 %v479, 28
      %v1345 = vpop.permute.xlu0 %1344
      %1346 = vrot.lane.b32.xlu0 %v480, 28
      %v1347 = vpop.permute.xlu0 %1346
      %1348 = vrot.lane.b32.xlu0 %v481, 28
      %v1349 = vpop.permute.xlu0 %1348
      %1350 = vrot.lane.b32.xlu0 %v482, 28
      %v1351 = vpop.permute.xlu0 %1350
      %1352 = vrot.lane.b32.xlu0 %v483, 28
      %v1353 = vpop.permute.xlu0 %1352
      %1354 = vrot.lane.b32.xlu0 %v484, 28
      %v1355 = vpop.permute.xlu0 %1354
      %1356 = vrot.lane.b32.xlu0 %v485, 28
      %v1357 = vpop.permute.xlu0 %1356
      %1358 = vrot.lane.b32.xlu0 %v486, 28
      %v1359 = vpop.permute.xlu0 %1358
      %1360 = vrot.lane.b32.xlu0 %v487, 28
      %v1361 = vpop.permute.xlu0 %1360
      %1362 = vrot.lane.b32.xlu0 %v488, 28
      %v1363 = vpop.permute.xlu0 %1362
      %1364 = vrot.lane.b32.xlu0 %v489, 28
      %v1365 = vpop.permute.xlu0 %1364
      %1366 = vrot.lane.b32.xlu0 %v490, 28
      %v1367 = vpop.permute.xlu0 %1366
      %1368 = vrot.lane.b32.xlu0 %v491, 28
      %v1369 = vpop.permute.xlu0 %1368
      %1370 = vrot.lane.b32.xlu0 %v492, 28
      %v1371 = vpop.permute.xlu0 %1370
      %1372 = vrot.lane.b32.xlu0 %v493, 28
      %v1373 = vpop.permute.xlu0 %1372
      %1374 = vrot.lane.b32.xlu0 %v494, 28
      %v1375 = vpop.permute.xlu0 %1374
      %1376 = vrot.lane.b32.xlu0 %v495, 28
      %v1377 = vpop.permute.xlu0 %1376
      %1378 = vrot.lane.b32.xlu0 %v496, 28
      %v1379 = vpop.permute.xlu0 %1378
      %1380 = vrot.lane.b32.xlu0 %v497, 28
      %v1381 = vpop.permute.xlu0 %1380
      %1382 = vrot.lane.b32.xlu0 %v498, 28
      %v1383 = vpop.permute.xlu0 %1382
      %1384 = vrot.lane.b32.xlu0 %v499, 28
      %v1385 = vpop.permute.xlu0 %1384
      %1386 = vrot.lane.b32.xlu0 %v500, 28
      %v1387 = vpop.permute.xlu0 %1386
      %1388 = vrot.lane.b32.xlu0 %v501, 28
      %v1389 = vpop.permute.xlu0 %1388
      %1390 = vrot.lane.b32.xlu0 %v502, 28
      %v1391 = vpop.permute.xlu0 %1390
      %1392 = vrot.lane.b32.xlu0 %v503, 28
      %v1393 = vpop.permute.xlu0 %1392
      %1394 = vrot.lane.b32.xlu0 %v504, 28
      %v1395 = vpop.permute.xlu0 %1394
      %1396 = vrot.lane.b32.xlu0 %v505, 28
      %v1397 = vpop.permute.xlu0 %1396
      %1398 = vrot.lane.b32.xlu0 %v506, 28
      %v1399 = vpop.permute.xlu0 %1398
      %1400 = vrot.lane.b32.xlu0 %v507, 28
      %v1401 = vpop.permute.xlu0 %1400
      %1402 = vrot.lane.b32.xlu0 %v508, 28
      %v1403 = vpop.permute.xlu0 %1402
      %1404 = vrot.lane.b32.xlu0 %v509, 28
      %v1405 = vpop.permute.xlu0 %1404
      %1470 = vrot.lane.b32.xlu0 %v510, 32
      %v1471 = vpop.permute.xlu0 %1470
      %1472 = vrot.lane.b32.xlu0 %v511, 32
      %v1473 = vpop.permute.xlu0 %1472
      %1474 = vrot.lane.b32.xlu0 %v512, 32
      %v1475 = vpop.permute.xlu0 %1474
      %1476 = vrot.lane.b32.xlu0 %v513, 32
      %v1477 = vpop.permute.xlu0 %1476
      %1478 = vrot.lane.b32.xlu0 %v514, 32
      %v1479 = vpop.permute.xlu0 %1478
      %1480 = vrot.lane.b32.xlu0 %v515, 32
      %v1481 = vpop.permute.xlu0 %1480
      %1482 = vrot.lane.b32.xlu0 %v516, 32
      %v1483 = vpop.permute.xlu0 %1482
      %1484 = vrot.lane.b32.xlu0 %v517, 32
      %v1485 = vpop.permute.xlu0 %1484
      %1486 = vrot.lane.b32.xlu0 %v518, 32
      %v1487 = vpop.permute.xlu0 %1486
      %1488 = vrot.lane.b32.xlu0 %v519, 32
      %v1489 = vpop.permute.xlu0 %1488
      %1490 = vrot.lane.b32.xlu0 %v520, 32
      %v1491 = vpop.permute.xlu0 %1490
      %1492 = vrot.lane.b32.xlu0 %v521, 32
      %v1493 = vpop.permute.xlu0 %1492
      %1494 = vrot.lane.b32.xlu0 %v522, 32
      %v1495 = vpop.permute.xlu0 %1494
      %1496 = vrot.lane.b32.xlu0 %v523, 32
      %v1497 = vpop.permute.xlu0 %1496
      %1498 = vrot.lane.b32.xlu0 %v524, 32
      %v1499 = vpop.permute.xlu0 %1498
      %1500 = vrot.lane.b32.xlu0 %v525, 32
      %v1501 = vpop.permute.xlu0 %1500
      %1502 = vrot.lane.b32.xlu0 %v526, 32
      %v1503 = vpop.permute.xlu0 %1502
      %1504 = vrot.lane.b32.xlu0 %v527, 32
      %v1505 = vpop.permute.xlu0 %1504
      %1506 = vrot.lane.b32.xlu0 %v528, 32
      %v1507 = vpop.permute.xlu0 %1506
      %1508 = vrot.lane.b32.xlu0 %v529, 32
      %v1509 = vpop.permute.xlu0 %1508
      %1510 = vrot.lane.b32.xlu0 %v530, 32
      %v1511 = vpop.permute.xlu0 %1510
      %1512 = vrot.lane.b32.xlu0 %v531, 32
      %v1513 = vpop.permute.xlu0 %1512
      %1514 = vrot.lane.b32.xlu0 %v532, 32
      %v1515 = vpop.permute.xlu0 %1514
      %1516 = vrot.lane.b32.xlu0 %v533, 32
      %v1517 = vpop.permute.xlu0 %1516
      %1518 = vrot.lane.b32.xlu0 %v534, 32
      %v1519 = vpop.permute.xlu0 %1518
      %1520 = vrot.lane.b32.xlu0 %v535, 32
      %v1521 = vpop.permute.xlu0 %1520
      %1522 = vrot.lane.b32.xlu0 %v536, 32
      %v1523 = vpop.permute.xlu0 %1522
      %1524 = vrot.lane.b32.xlu0 %v537, 32
      %v1525 = vpop.permute.xlu0 %1524
      %1526 = vrot.lane.b32.xlu0 %v538, 32
      %v1527 = vpop.permute.xlu0 %1526
      %1528 = vrot.lane.b32.xlu0 %v539, 32
      %v1529 = vpop.permute.xlu0 %1528
      %1530 = vrot.lane.b32.xlu0 %v540, 32
      %v1531 = vpop.permute.xlu0 %1530
      %1532 = vrot.lane.b32.xlu0 %v541, 32
      %v1533 = vpop.permute.xlu0 %1532
      %vm1566 = vcmask 31744
      %v1567 = vsel %vm1566, %v252, %v575
      %v1568 = vsel %vm1566, %v253, %v577
      %v1569 = vsel %vm1566, %v254, %v579
      %v1570 = vsel %vm1566, %v255, %v581
      %v1571 = vsel %vm1566, %v256, %v583
      %v1572 = vsel %vm1566, %v257, %v585
      %v1573 = vsel %vm1566, %v258, %v587
      %v1574 = vsel %vm1566, %v259, %v589
      %v1575 = vsel %vm1566, %v260, %v591
      %v1576 = vsel %vm1566, %v261, %v593
      %v1577 = vsel %vm1566, %v262, %v595
      %v1578 = vsel %vm1566, %v263, %v597
      %v1579 = vsel %vm1566, %v264, %v599
      %v1580 = vsel %vm1566, %v265, %v601
      %v1581 = vsel %vm1566, %v266, %v603
      %v1582 = vsel %vm1566, %v267, %v605
      %v1583 = vsel %vm1566, %v268, %v607
      %v1584 = vsel %vm1566, %v269, %v609
      %v1585 = vsel %vm1566, %v270, %v611
      %v1586 = vsel %vm1566, %v271, %v613
      %v1587 = vsel %vm1566, %v272, %v615
      %v1588 = vsel %vm1566, %v273, %v617
      %v1589 = vsel %vm1566, %v274, %v619
      %v1590 = vsel %vm1566, %v275, %v621
      %v1591 = vsel %vm1566, %v276, %v623
      %v1592 = vsel %vm1566, %v277, %v625
      %v1593 = vsel %vm1566, %v278, %v627
      %v1594 = vsel %vm1566, %v279, %v629
      %v1595 = vsel %vm1566, %v280, %v631
      %v1596 = vsel %vm1566, %v281, %v633
      %v1597 = vsel %vm1566, %v282, %v635
      %v1598 = vsel %vm1566, %v283, %v637
      %vm1599 = vcmask 64512
      %v1600 = vsel %vm1599, %v1567, %v703
      %v1601 = vsel %vm1599, %v1568, %v705
      %v1602 = vsel %vm1599, %v1569, %v707
      %v1603 = vsel %vm1599, %v1570, %v709
      %v1604 = vsel %vm1599, %v1571, %v711
      %v1605 = vsel %vm1599, %v1572, %v713
      %v1606 = vsel %vm1599, %v1573, %v715
      %v1607 = vsel %vm1599, %v1574, %v717
      %v1608 = vsel %vm1599, %v1575, %v719
      %v1609 = vsel %vm1599, %v1576, %v721
      %v1610 = vsel %vm1599, %v1577, %v723
      %v1611 = vsel %vm1599, %v1578, %v725
      %v1612 = vsel %vm1599, %v1579, %v727
      %v1613 = vsel %vm1599, %v1580, %v729
      %v1614 = vsel %vm1599, %v1581, %v731
      %v1615 = vsel %vm1599, %v1582, %v733
      %v1616 = vsel %vm1599, %v1583, %v735
      %v1617 = vsel %vm1599, %v1584, %v737
      %v1618 = vsel %vm1599, %v1585, %v739
      %v1619 = vsel %vm1599, %v1586, %v741
      %v1620 = vsel %vm1599, %v1587, %v743
      %v1621 = vsel %vm1599, %v1588, %v745
      %v1622 = vsel %vm1599, %v1589, %v747
      %v1623 = vsel %vm1599, %v1590, %v749
      %v1624 = vsel %vm1599, %v1591, %v751
      %v1625 = vsel %vm1599, %v1592, %v753
      %v1626 = vsel %vm1599, %v1593, %v755
      %v1627 = vsel %vm1599, %v1594, %v757
      %v1628 = vsel %vm1599, %v1595, %v759
      %v1629 = vsel %vm1599, %v1596, %v761
      %v1630 = vsel %vm1599, %v1597, %v763
      %v1631 = vsel %vm1599, %v1598, %v765
      %vm1632 = vcmask 97280
      %v1633 = vsel %vm1632, %v1600, %v831
      %v1634 = vsel %vm1632, %v1601, %v833
      %v1635 = vsel %vm1632, %v1602, %v835
      %v1636 = vsel %vm1632, %v1603, %v837
      %v1637 = vsel %vm1632, %v1604, %v839
      %v1638 = vsel %vm1632, %v1605, %v841
      %v1639 = vsel %vm1632, %v1606, %v843
      %v1640 = vsel %vm1632, %v1607, %v845
      %v1641 = vsel %vm1632, %v1608, %v847
      %v1642 = vsel %vm1632, %v1609, %v849
      %v1643 = vsel %vm1632, %v1610, %v851
      %v1644 = vsel %vm1632, %v1611, %v853
      %v1645 = vsel %vm1632, %v1612, %v855
      %v1646 = vsel %vm1632, %v1613, %v857
      %v1647 = vsel %vm1632, %v1614, %v859
      %v1648 = vsel %vm1632, %v1615, %v861
      %v1649 = vsel %vm1632, %v1616, %v863
      %v1650 = vsel %vm1632, %v1617, %v865
      %v1651 = vsel %vm1632, %v1618, %v867
      %v1652 = vsel %vm1632, %v1619, %v869
      %v1653 = vsel %vm1632, %v1620, %v871
      %v1654 = vsel %vm1632, %v1621, %v873
      %v1655 = vsel %vm1632, %v1622, %v875
      %v1656 = vsel %vm1632, %v1623, %v877
      %v1657 = vsel %vm1632, %v1624, %v879
      %v1658 = vsel %vm1632, %v1625, %v881
      %v1659 = vsel %vm1632, %v1626, %v883
      %v1660 = vsel %vm1632, %v1627, %v885
      %v1661 = vsel %vm1632, %v1628, %v887
      %v1662 = vsel %vm1632, %v1629, %v889
      %v1663 = vsel %vm1632, %v1630, %v891
      %v1664 = vsel %vm1632, %v1631, %v893
      %vm1665 = vcmask 130048
      %v1666 = vsel %vm1665, %v1633, %v959
      %v1667 = vsel %vm1665, %v1634, %v961
      %v1668 = vsel %vm1665, %v1635, %v963
      %v1669 = vsel %vm1665, %v1636, %v965
      %v1670 = vsel %vm1665, %v1637, %v967
      %v1671 = vsel %vm1665, %v1638, %v969
      %v1672 = vsel %vm1665, %v1639, %v971
      %v1673 = vsel %vm1665, %v1640, %v973
      %v1674 = vsel %vm1665, %v1641, %v975
      %v1675 = vsel %vm1665, %v1642, %v977
      %v1676 = vsel %vm1665, %v1643, %v979
      %v1677 = vsel %vm1665, %v1644, %v981
      %v1678 = vsel %vm1665, %v1645, %v983
      %v1679 = vsel %vm1665, %v1646, %v985
      %v1680 = vsel %vm1665, %v1647, %v987
      %v1681 = vsel %vm1665, %v1648, %v989
      %v1682 = vsel %vm1665, %v1649, %v991
      %v1683 = vsel %vm1665, %v1650, %v993
      %v1684 = vsel %vm1665, %v1651, %v995
      %v1685 = vsel %vm1665, %v1652, %v997
      %v1686 = vsel %vm1665, %v1653, %v999
      %v1687 = vsel %vm1665, %v1654, %v1001
      %v1688 = vsel %vm1665, %v1655, %v1003
      %v1689 = vsel %vm1665, %v1656, %v1005
      %v1690 = vsel %vm1665, %v1657, %v1007
      %v1691 = vsel %vm1665, %v1658, %v1009
      %v1692 = vsel %vm1665, %v1659, %v1011
      %v1693 = vsel %vm1665, %v1660, %v1013
      %v1694 = vsel %vm1665, %v1661, %v1015
      %v1695 = vsel %vm1665, %v1662, %v1017
      %v1696 = vsel %vm1665, %v1663, %v1019
      %v1697 = vsel %vm1665, %v1664, %v1021
      %vm1698 = vcmask 162816
      %v1699 = vsel %vm1698, %v1666, %v1087
      %v1700 = vsel %vm1698, %v1667, %v1089
      %v1701 = vsel %vm1698, %v1668, %v1091
      %v1702 = vsel %vm1698, %v1669, %v1093
      %v1703 = vsel %vm1698, %v1670, %v1095
      %v1704 = vsel %vm1698, %v1671, %v1097
      %v1705 = vsel %vm1698, %v1672, %v1099
      %v1706 = vsel %vm1698, %v1673, %v1101
      %v1707 = vsel %vm1698, %v1674, %v1103
      %v1708 = vsel %vm1698, %v1675, %v1105
      %v1709 = vsel %vm1698, %v1676, %v1107
      %v1710 = vsel %vm1698, %v1677, %v1109
      %v1711 = vsel %vm1698, %v1678, %v1111
      %v1712 = vsel %vm1698, %v1679, %v1113
      %v1713 = vsel %vm1698, %v1680, %v1115
      %v1714 = vsel %vm1698, %v1681, %v1117
      %v1715 = vsel %vm1698, %v1682, %v1119
      %v1716 = vsel %vm1698, %v1683, %v1121
      %v1717 = vsel %vm1698, %v1684, %v1123
      %v1718 = vsel %vm1698, %v1685, %v1125
      %v1719 = vsel %vm1698, %v1686, %v1127
      %v1720 = vsel %vm1698, %v1687, %v1129
      %v1721 = vsel %vm1698, %v1688, %v1131
      %v1722 = vsel %vm1698, %v1689, %v1133
      %v1723 = vsel %vm1698, %v1690, %v1135
      %v1724 = vsel %vm1698, %v1691, %v1137
      %v1725 = vsel %vm1698, %v1692, %v1139
      %v1726 = vsel %vm1698, %v1693, %v1141
      %v1727 = vsel %vm1698, %v1694, %v1143
      %v1728 = vsel %vm1698, %v1695, %v1145
      %v1729 = vsel %vm1698, %v1696, %v1147
      %v1730 = vsel %vm1698, %v1697, %v1149
      %vm1731 = vcmask 195584
      %v1732 = vsel %vm1731, %v1699, %v1215
      %v1733 = vsel %vm1731, %v1700, %v1217
      %v1734 = vsel %vm1731, %v1701, %v1219
      %v1735 = vsel %vm1731, %v1702, %v1221
      %v1736 = vsel %vm1731, %v1703, %v1223
      %v1737 = vsel %vm1731, %v1704, %v1225
      %v1738 = vsel %vm1731, %v1705, %v1227
      %v1739 = vsel %vm1731, %v1706, %v1229
      %v1740 = vsel %vm1731, %v1707, %v1231
      %v1741 = vsel %vm1731, %v1708, %v1233
      %v1742 = vsel %vm1731, %v1709, %v1235
      %v1743 = vsel %vm1731, %v1710, %v1237
      %v1744 = vsel %vm1731, %v1711, %v1239
      %v1745 = vsel %vm1731, %v1712, %v1241
      %v1746 = vsel %vm1731, %v1713, %v1243
      %v1747 = vsel %vm1731, %v1714, %v1245
      %v1748 = vsel %vm1731, %v1715, %v1247
      %v1749 = vsel %vm1731, %v1716, %v1249
      %v1750 = vsel %vm1731, %v1717, %v1251
      %v1751 = vsel %vm1731, %v1718, %v1253
      %v1752 = vsel %vm1731, %v1719, %v1255
      %v1753 = vsel %vm1731, %v1720, %v1257
      %v1754 = vsel %vm1731, %v1721, %v1259
      %v1755 = vsel %vm1731, %v1722, %v1261
      %v1756 = vsel %vm1731, %v1723, %v1263
      %v1757 = vsel %vm1731, %v1724, %v1265
      %v1758 = vsel %vm1731, %v1725, %v1267
      %v1759 = vsel %vm1731, %v1726, %v1269
      %v1760 = vsel %vm1731, %v1727, %v1271
      %v1761 = vsel %vm1731, %v1728, %v1273
      %v1762 = vsel %vm1731, %v1729, %v1275
      %v1763 = vsel %vm1731, %v1730, %v1277
      %vm1764 = vcmask 228352
      %v1765 = vsel %vm1764, %v1732, %v1343
      %v1766 = vsel %vm1764, %v1733, %v1345
      %v1767 = vsel %vm1764, %v1734, %v1347
      %v1768 = vsel %vm1764, %v1735, %v1349
      %v1769 = vsel %vm1764, %v1736, %v1351
      %v1770 = vsel %vm1764, %v1737, %v1353
      %v1771 = vsel %vm1764, %v1738, %v1355
      %v1772 = vsel %vm1764, %v1739, %v1357
      %v1773 = vsel %vm1764, %v1740, %v1359
      %v1774 = vsel %vm1764, %v1741, %v1361
      %v1775 = vsel %vm1764, %v1742, %v1363
      %v1776 = vsel %vm1764, %v1743, %v1365
      %v1777 = vsel %vm1764, %v1744, %v1367
      %v1778 = vsel %vm1764, %v1745, %v1369
      %v1779 = vsel %vm1764, %v1746, %v1371
      %v1780 = vsel %vm1764, %v1747, %v1373
      %v1781 = vsel %vm1764, %v1748, %v1375
      %v1782 = vsel %vm1764, %v1749, %v1377
      %v1783 = vsel %vm1764, %v1750, %v1379
      %v1784 = vsel %vm1764, %v1751, %v1381
      %v1785 = vsel %vm1764, %v1752, %v1383
      %v1786 = vsel %vm1764, %v1753, %v1385
      %v1787 = vsel %vm1764, %v1754, %v1387
      %v1788 = vsel %vm1764, %v1755, %v1389
      %v1789 = vsel %vm1764, %v1756, %v1391
      %v1790 = vsel %vm1764, %v1757, %v1393
      %v1791 = vsel %vm1764, %v1758, %v1395
      %v1792 = vsel %vm1764, %v1759, %v1397
      %v1793 = vsel %vm1764, %v1760, %v1399
      %v1794 = vsel %vm1764, %v1761, %v1401
      %v1795 = vsel %vm1764, %v1762, %v1403
      %v1796 = vsel %vm1764, %v1763, %v1405
      %vm1797 = vcmask 261120
      %v1798 = vsel %vm1797, %v1765, %v1471
      %v1799 = vsel %vm1797, %v1766, %v1473
      %v1800 = vsel %vm1797, %v1767, %v1475
      %v1801 = vsel %vm1797, %v1768, %v1477
      %v1802 = vsel %vm1797, %v1769, %v1479
      %v1803 = vsel %vm1797, %v1770, %v1481
      %v1804 = vsel %vm1797, %v1771, %v1483
      %v1805 = vsel %vm1797, %v1772, %v1485
      %v1806 = vsel %vm1797, %v1773, %v1487
      %v1807 = vsel %vm1797, %v1774, %v1489
      %v1808 = vsel %vm1797, %v1775, %v1491
      %v1809 = vsel %vm1797, %v1776, %v1493
      %v1810 = vsel %vm1797, %v1777, %v1495
      %v1811 = vsel %vm1797, %v1778, %v1497
      %v1812 = vsel %vm1797, %v1779, %v1499
      %v1813 = vsel %vm1797, %v1780, %v1501
      %v1814 = vsel %vm1797, %v1781, %v1503
      %v1815 = vsel %vm1797, %v1782, %v1505
      %v1816 = vsel %vm1797, %v1783, %v1507
      %v1817 = vsel %vm1797, %v1784, %v1509
      %v1818 = vsel %vm1797, %v1785, %v1511
      %v1819 = vsel %vm1797, %v1786, %v1513
      %v1820 = vsel %vm1797, %v1787, %v1515
      %v1821 = vsel %vm1797, %v1788, %v1517
      %v1822 = vsel %vm1797, %v1789, %v1519
      %v1823 = vsel %vm1797, %v1790, %v1521
      %v1824 = vsel %vm1797, %v1791, %v1523
      %v1825 = vsel %vm1797, %v1792, %v1525
      %v1826 = vsel %vm1797, %v1793, %v1527
      %v1827 = vsel %vm1797, %v1794, %v1529
      %v1828 = vsel %vm1797, %v1795, %v1531
      %v1829 = vsel %vm1797, %v1796, %v1533
      %v1830 = vld [vmem:[%s1] sm:$0xff]
      %v1831 = vld [vmem:[%s1 + $0x8] sm:$0xff]
      %v1832 = vld [vmem:[%s1 + $0x10] sm:$0xff]
      %v1833 = vld [vmem:[%s1 + $0x18] sm:$0xff]
      %v1834 = vld [vmem:[%s1 + $0x20] sm:$0xf]
      %v1835 = vld [vmem:[%s2] sm:$0x1]
      %v1837 = vlaneseq
      %v1838 = vshrl.u32 %v1837, 7
      %v1839 = vsub.s32 0, %v1838
      %v1840 = vrot.slane %v1835, %v1839
      %vm1842 = vcmask 293888
      %v1844 = vsel %vm1842, %v1798, 0
      %v1847 = vsel %vm1842, %v1799, 0
      %v1850 = vsel %vm1842, %v1800, 0
      %v1853 = vsel %vm1842, %v1801, 0
      %v1856 = vsel %vm1842, %v1802, 0
      %v1859 = vsel %vm1842, %v1803, 0
      %v1862 = vsel %vm1842, %v1804, 0
      %v1865 = vsel %vm1842, %v1805, 0
      %v1868 = vsel %vm1842, %v1806, 0
      %v1871 = vsel %vm1842, %v1807, 0
      %v1874 = vsel %vm1842, %v1808, 0
      %v1877 = vsel %vm1842, %v1809, 0
      %v1880 = vsel %vm1842, %v1810, 0
      %v1883 = vsel %vm1842, %v1811, 0
      %v1886 = vsel %vm1842, %v1812, 0
      %v1889 = vsel %vm1842, %v1813, 0
      %v1892 = vsel %vm1842, %v1814, 0
      %v1895 = vsel %vm1842, %v1815, 0
      %v1898 = vsel %vm1842, %v1816, 0
      %v1901 = vsel %vm1842, %v1817, 0
      %v1904 = vsel %vm1842, %v1818, 0
      %v1907 = vsel %vm1842, %v1819, 0
      %v1910 = vsel %vm1842, %v1820, 0
      %v1913 = vsel %vm1842, %v1821, 0
      %v1916 = vsel %vm1842, %v1822, 0
      %v1919 = vsel %vm1842, %v1823, 0
      %v1922 = vsel %vm1842, %v1824, 0
      %v1925 = vsel %vm1842, %v1825, 0
      %v1928 = vsel %vm1842, %v1826, 0
      %v1931 = vsel %vm1842, %v1827, 0
      %v1934 = vsel %vm1842, %v1828, 0
      %v1937 = vsel %vm1842, %v1829, 0
      %vm1939 = vcmask 1043456
      %v1941 = vsel %vm1939, %v1834, 0
      %1943 = vmatprep.subr.mxu0 0.0
      %1944 = vmatpush1.msra.mxu0 %v1830
      %1945 = vmatprep.subr.mxu0 0.0
      %1946 = vmatpush1.msra.mxu0 %v1831
      %1947 = vmatprep.subr.mxu0 0.0
      %1948 = vmatpush1.msra.mxu0 %v1832
      %1949 = vmatprep.subr.mxu0 0.0
      %1950 = vmatpush1.msra.mxu0 %v1833
      %1951 = vmatprep.subr.mxu0 0.0
      %1952 = vmatpush1.msra.mxu0 %v1941
      %1953 = vmatprep.subr.mxu0 0.0
      %1954 = vmatpush1.msra.mxu0 0.0
      %1955 = vmatprep.subr.mxu0 0.0
      %1956 = vmatpush1.msra.mxu0 0.0
      %1957 = vmatprep.subr.mxu0 0.0
      %1958 = vmatpush1.msra.mxu0 0.0
      %1959 = vmatprep.subr.mxu0 0.0
      %1960 = vmatpush1.msra.mxu0 0.0
      %1961 = vmatprep.subr.mxu0 0.0
      %1962 = vmatpush1.msra.mxu0 0.0
      %1963 = vmatprep.subr.mxu0 0.0
      %1964 = vmatpush1.msra.mxu0 0.0
      %1965 = vmatprep.subr.mxu0 0.0
      %1966 = vmatpush1.msra.mxu0 0.0
      %1967 = vmatprep.subr.mxu0 0.0
      %1968 = vmatpush1.msra.mxu0 0.0
      %1969 = vmatprep.subr.mxu0 0.0
      %1970 = vmatpush1.msra.mxu0 0.0
      %1971 = vmatprep.subr.mxu0 0.0
      %1972 = vmatpush1.msra.mxu0 0.0
      %1973 = vmatprep.subr.mxu0 0.0
      %1974 = vmatpush1.msra.mxu0 0.0
      %1975 = vmatprep.subr.mxu0 0.0
      %1976 = vmatpush1.msra.mxu0 0.0
      %1977 = vmatprep.subr.mxu0 0.0
      %1978 = vmatpush1.msra.mxu0 0.0
      %1979 = vmatprep.subr.mxu0 0.0
      %1980 = vmatpush1.msra.mxu0 0.0
      %1981 = vmatprep.subr.mxu0 0.0
      %1982 = vmatpush1.msra.mxu0 0.0
      %1983 = vmatprep.subr.mxu0 0.0
      %1984 = vmatpush1.msra.mxu0 0.0
      %1985 = vmatprep.subr.mxu0 0.0
      %1986 = vmatpush1.msra.mxu0 0.0
      %1987 = vmatprep.subr.mxu0 0.0
      %1988 = vmatpush1.msra.mxu0 0.0
      %1989 = vmatprep.subr.mxu0 0.0
      %1990 = vmatpush1.msra.mxu0 0.0
      %1991 = vmatprep.subr.mxu0 0.0
      %1992 = vmatpush1.msra.mxu0 0.0
      %1993 = vmatprep.subr.mxu0 0.0
      %1994 = vmatpush1.msra.mxu0 0.0
      %1995 = vmatprep.subr.mxu0 0.0
      %1996 = vmatpush1.msra.mxu0 0.0
      %1997 = vmatprep.subr.mxu0 0.0
      %1998 = vmatpush1.msra.mxu0 0.0
      %1999 = vmatprep.subr.mxu0 0.0
      %2000 = vmatpush1.msra.mxu0 0.0
      %2001 = vmatprep.subr.mxu0 0.0
      %2002 = vmatpush1.msra.mxu0 0.0
      %2003 = vmatprep.subr.mxu0 0.0
      %2004 = vmatpush1.msra.mxu0 0.0
      %2005 = vmatprep.subr.mxu0 0.0
      %2006 = vmatpush1.msra.mxu0 0.0
      %2007 = vmatprep.mubr.f32.mxu0 0.0
      %2008 = vmatmul.mubr.f32.gmra.mrb[0].mxu0 %v1844
      %v2009 = vpop.f32.mrb[0].mxu0
      %v2010 = vadd.f32 %v1840, %v2009
      %v2011 = vpop.f32.mrb[0].mxu0
      %2012 = vmatprep.mubr.f32.mxu0 0.0
      %2013 = vmatmul.mubr.f32.gmra.mrb[0].mxu0 %v1847
      %v2014 = vpop.f32.mrb[0].mxu0
      %v2015 = vadd.f32 %v1840, %v2014
      %v2016 = vpop.f32.mrb[0].mxu0
      %2017 = vmatprep.mubr.f32.mxu0 0.0
      %2018 = vmatmul.mubr.f32.gmra.mrb[0].mxu0 %v1850
      %v2019 = vpop.f32.mrb[0].mxu0
      %v2020 = vadd.f32 %v1840, %v2019
      %v2021 = vpop.f32.mrb[0].mxu0
      %2022 = vmatprep.mubr.f32.mxu0 0.0
      %2023 = vmatmul.mubr.f32.gmra.mrb[0].mxu0 %v1853
      %v2024 = vpop.f32.mrb[0].mxu0
      %v2025 = vadd.f32 %v1840, %v2024
      %v2026 = vpop.f32.mrb[0].mxu0
      %2027 = vmatprep.mubr.f32.mxu0 0.0
      %2028 = vmatmul.mubr.f32.gmra.mrb[0].mxu0 %v1856
      %v2029 = vpop.f32.mrb[0].mxu0
      %v2030 = vadd.f32 %v1840, %v2029
      %v2031 = vpop.f32.mrb[0].mxu0
      %2032 = vmatprep.mubr.f32.mxu0 0.0
      %2033 = vmatmul.mubr.f32.gmra.mrb[0].mxu0 %v1859
      %v2034 = vpop.f32.mrb[0].mxu0
      %v2035 = vadd.f32 %v1840, %v2034
      %v2036 = vpop.f32.mrb[0].mxu0
      %2037 = vmatprep.mubr.f32.mxu0 0.0
      %2038 = vmatmul.mubr.f32.gmra.mrb[0].mxu0 %v1862
      %v2039 = vpop.f32.mrb[0].mxu0
      %v2040 = vadd.f32 %v1840, %v2039
      %v2041 = vpop.f32.mrb[0].mxu0
      %2042 = vmatprep.mubr.f32.mxu0 0.0
      %2043 = vmatmul.mubr.f32.gmra.mrb[0].mxu0 %v1865
      %v2044 = vpop.f32.mrb[0].mxu0
      %v2045 = vadd.f32 %v1840, %v2044
      %v2046 = vpop.f32.mrb[0].mxu0
      %2047 = vmatprep.mubr.f32.mxu0 0.0
      %2048 = vmatmul.mubr.f32.gmra.mrb[0].mxu0 %v1868
      %v2049 = vpop.f32.mrb[0].mxu0
      %v2050 = vadd.f32 %v1840, %v2049
      %v2051 = vpop.f32.mrb[0].mxu0
      %2052 = vmatprep.mubr.f32.mxu0 0.0
      %2053 = vmatmul.mubr.f32.gmra.mrb[0].mxu0 %v1871
      %v2054 = vpop.f32.mrb[0].mxu0
      %v2055 = vadd.f32 %v1840, %v2054
      %v2056 = vpop.f32.mrb[0].mxu0
      %2057 = vmatprep.mubr.f32.mxu0 0.0
      %2058 = vmatmul.mubr.f32.gmra.mrb[0].mxu0 %v1874
      %v2059 = vpop.f32.mrb[0].mxu0
      %v2060 = vadd.f32 %v1840, %v2059
      %v2061 = vpop.f32.mrb[0].mxu0
      %2062 = vmatprep.mubr.f32.mxu0 0.0
      %2063 = vmatmul.mubr.f32.gmra.mrb[0].mxu0 %v1877
      %v2064 = vpop.f32.mrb[0].mxu0
      %v2065 = vadd.f32 %v1840, %v2064
      %v2066 = vpop.f32.mrb[0].mxu0
      %2067 = vmatprep.mubr.f32.mxu0 0.0
      %2068 = vmatmul.mubr.f32.gmra.mrb[0].mxu0 %v1880
      %v2069 = vpop.f32.mrb[0].mxu0
      %v2070 = vadd.f32 %v1840, %v2069
      %v2071 = vpop.f32.mrb[0].mxu0
      %2072 = vmatprep.mubr.f32.mxu0 0.0
      %2073 = vmatmul.mubr.f32.gmra.mrb[0].mxu0 %v1883
      %v2074 = vpop.f32.mrb[0].mxu0
      %v2075 = vadd.f32 %v1840, %v2074
      %v2076 = vpop.f32.mrb[0].mxu0
      %2077 = vmatprep.mubr.f32.mxu0 0.0
      %2078 = vmatmul.mubr.f32.gmra.mrb[0].mxu0 %v1886
      %v2079 = vpop.f32.mrb[0].mxu0
      %v2080 = vadd.f32 %v1840, %v2079
      %v2081 = vpop.f32.mrb[0].mxu0
      %2082 = vmatprep.mubr.f32.mxu0 0.0
      %2083 = vmatmul.mubr.f32.gmra.mrb[0].mxu0 %v1889
      %v2084 = vpop.f32.mrb[0].mxu0
      %v2085 = vadd.f32 %v1840, %v2084
      %v2086 = vpop.f32.mrb[0].mxu0
      %2087 = vmatprep.mubr.f32.mxu0 0.0
      %2088 = vmatmul.mubr.f32.gmra.mrb[0].mxu0 %v1892
      %v2089 = vpop.f32.mrb[0].mxu0
      %v2090 = vadd.f32 %v1840, %v2089
      %v2091 = vpop.f32.mrb[0].mxu0
      %2092 = vmatprep.mubr.f32.mxu0 0.0
      %2093 = vmatmul.mubr.f32.gmra.mrb[0].mxu0 %v1895
      %v2094 = vpop.f32.mrb[0].mxu0
      %v2095 = vadd.f32 %v1840, %v2094
      %v2096 = vpop.f32.mrb[0].mxu0
      %2097 = vmatprep.mubr.f32.mxu0 0.0
      %2098 = vmatmul.mubr.f32.gmra.mrb[0].mxu0 %v1898
      %v2099 = vpop.f32.mrb[0].mxu0
      %v2100 = vadd.f32 %v1840, %v2099
      %v2101 = vpop.f32.mrb[0].mxu0
      %2102 = vmatprep.mubr.f32.mxu0 0.0
      %2103 = vmatmul.mubr.f32.gmra.mrb[0].mxu0 %v1901
      %v2104 = vpop.f32.mrb[0].mxu0
      %v2105 = vadd.f32 %v1840, %v2104
      %v2106 = vpop.f32.mrb[0].mxu0
      %2107 = vmatprep.mubr.f32.mxu0 0.0
      %2108 = vmatmul.mubr.f32.gmra.mrb[0].mxu0 %v1904
      %v2109 = vpop.f32.mrb[0].mxu0
      %v2110 = vadd.f32 %v1840, %v2109
      %v2111 = vpop.f32.mrb[0].mxu0
      %2112 = vmatprep.mubr.f32.mxu0 0.0
      %2113 = vmatmul.mubr.f32.gmra.mrb[0].mxu0 %v1907
      %v2114 = vpop.f32.mrb[0].mxu0
      %v2115 = vadd.f32 %v1840, %v2114
      %v2116 = vpop.f32.mrb[0].mxu0
      %2117 = vmatprep.mubr.f32.mxu0 0.0
      %2118 = vmatmul.mubr.f32.gmra.mrb[0].mxu0 %v1910
      %v2119 = vpop.f32.mrb[0].mxu0
      %v2120 = vadd.f32 %v1840, %v2119
      %v2121 = vpop.f32.mrb[0].mxu0
      %2122 = vmatprep.mubr.f32.mxu0 0.0
      %2123 = vmatmul.mubr.f32.gmra.mrb[0].mxu0 %v1913
      %v2124 = vpop.f32.mrb[0].mxu0
      %v2125 = vadd.f32 %v1840, %v2124
      %v2126 = vpop.f32.mrb[0].mxu0
      %2127 = vmatprep.mubr.f32.mxu0 0.0
      %2128 = vmatmul.mubr.f32.gmra.mrb[0].mxu0 %v1916
      %v2129 = vpop.f32.mrb[0].mxu0
      %v2130 = vadd.f32 %v1840, %v2129
      %v2131 = vpop.f32.mrb[0].mxu0
      %2132 = vmatprep.mubr.f32.mxu0 0.0
      %2133 = vmatmul.mubr.f32.gmra.mrb[0].mxu0 %v1919
      %v2134 = vpop.f32.mrb[0].mxu0
      %v2135 = vadd.f32 %v1840, %v2134
      %v2136 = vpop.f32.mrb[0].mxu0
      %2137 = vmatprep.mubr.f32.mxu0 0.0
      %2138 = vmatmul.mubr.f32.gmra.mrb[0].mxu0 %v1922
      %v2139 = vpop.f32.mrb[0].mxu0
      %v2140 = vadd.f32 %v1840, %v2139
      %v2141 = vpop.f32.mrb[0].mxu0
      %2142 = vmatprep.mubr.f32.mxu0 0.0
      %2143 = vmatmul.mubr.f32.gmra.mrb[0].mxu0 %v1925
      %v2144 = vpop.f32.mrb[0].mxu0
      %v2145 = vadd.f32 %v1840, %v2144
      %v2146 = vpop.f32.mrb[0].mxu0
      %2147 = vmatprep.mubr.f32.mxu0 0.0
      %2148 = vmatmul.mubr.f32.gmra.mrb[0].mxu0 %v1928
      %v2149 = vpop.f32.mrb[0].mxu0
      %v2150 = vadd.f32 %v1840, %v2149
      %v2151 = vpop.f32.mrb[0].mxu0
      %2152 = vmatprep.mubr.f32.mxu0 0.0
      %2153 = vmatmul.mubr.f32.gmra.mrb[0].mxu0 %v1931
      %v2154 = vpop.f32.mrb[0].mxu0
      %v2155 = vadd.f32 %v1840, %v2154
      %v2156 = vpop.f32.mrb[0].mxu0
      %2157 = vmatprep.mubr.f32.mxu0 0.0
      %2158 = vmatmul.mubr.f32.gmra.mrb[0].mxu0 %v1934
      %v2159 = vpop.f32.mrb[0].mxu0
      %v2160 = vadd.f32 %v1840, %v2159
      %v2161 = vpop.f32.mrb[0].mxu0
      %2162 = vmatprep.mubr.f32.mxu0 0.0
      %2163 = vmatmul.mubr.f32.gmra.mrb[0].mxu0 %v1937
      %v2164 = vpop.f32.mrb[0].mxu0
      %v2165 = vadd.f32 %v1840, %v2164
      %v2166 = vpop.f32.mrb[0].mxu0
      %2167 = vdwg.mxu0
      %v2168 = vtanh.pop %v2010
      %v2169 = vtanh.pop %v2015
      %v2170 = vtanh.pop %v2020
      %v2171 = vtanh.pop %v2025
      %v2172 = vtanh.pop %v2030
      %v2173 = vtanh.pop %v2035
      %v2174 = vtanh.pop %v2040
      %v2175 = vtanh.pop %v2045
      %v2176 = vtanh.pop %v2050
      %v2177 = vtanh.pop %v2055
      %v2178 = vtanh.pop %v2060
      %v2179 = vtanh.pop %v2065
      %v2180 = vtanh.pop %v2070
      %v2181 = vtanh.pop %v2075
      %v2182 = vtanh.pop %v2080
      %v2183 = vtanh.pop %v2085
      %v2184 = vtanh.pop %v2090
      %v2185 = vtanh.pop %v2095
      %v2186 = vtanh.pop %v2100
      %v2187 = vtanh.pop %v2105
      %v2188 = vtanh.pop %v2110
      %v2189 = vtanh.pop %v2115
      %v2190 = vtanh.pop %v2120
      %v2191 = vtanh.pop %v2125
      %v2192 = vtanh.pop %v2130
      %v2193 = vtanh.pop %v2135
      %v2194 = vtanh.pop %v2140
      %v2195 = vtanh.pop %v2145
      %v2196 = vtanh.pop %v2150
      %v2197 = vtanh.pop %v2155
      %v2198 = vtanh.pop %v2160
      %v2199 = vtanh.pop %v2165
      %2200 = vst.msk [vmem:[%s251] sm:$0xff] %vm1665, %v2168
      %2201 = vst.msk [vmem:[%s251 + $0x8] sm:$0xff] %vm1665, %v2169
      %2202 = vst.msk [vmem:[%s251 + $0x10] sm:$0xff] %vm1665, %v2170
      %2203 = vst.msk [vmem:[%s251 + $0x18] sm:$0xff] %vm1665, %v2171
      %2204 = vst.msk [vmem:[%s251 + $0x20] sm:$0xff] %vm1665, %v2172
      %2205 = vst.msk [vmem:[%s251 + $0x28] sm:$0xff] %vm1665, %v2173
      %2206 = vst.msk [vmem:[%s251 + $0x30] sm:$0xff] %vm1665, %v2174
      %2207 = vst.msk [vmem:[%s251 + $0x38] sm:$0xff] %vm1665, %v2175
      %2208 = vst.msk [vmem:[%s251 + $0x40] sm:$0xff] %vm1665, %v2176
      %2209 = vst.msk [vmem:[%s251 + $0x48] sm:$0xff] %vm1665, %v2177
      %2210 = vst.msk [vmem:[%s251 + $0x50] sm:$0xff] %vm1665, %v2178
      %2211 = vst.msk [vmem:[%s251 + $0x58] sm:$0xff] %vm1665, %v2179
      %2212 = vst.msk [vmem:[%s251 + $0x60] sm:$0xff] %vm1665, %v2180
      %2213 = vst.msk [vmem:[%s251 + $0x68] sm:$0xff] %vm1665, %v2181
      %2214 = vst.msk [vmem:[%s251 + $0x70] sm:$0xff] %vm1665, %v2182
      %2215 = vst.msk [vmem:[%s251 + $0x78] sm:$0xff] %vm1665, %v2183
      %2216 = vst.msk [vmem:[%s251 + $0x80] sm:$0xff] %vm1665, %v2184
      %2217 = vst.msk [vmem:[%s251 + $0x88] sm:$0xff] %vm1665, %v2185
      %2218 = vst.msk [vmem:[%s251 + $0x90] sm:$0xff] %vm1665, %v2186
      %2219 = vst.msk [vmem:[%s251 + $0x98] sm:$0xff] %vm1665, %v2187
      %2220 = vst.msk [vmem:[%s251 + $0xa0] sm:$0xff] %vm1665, %v2188
      %2221 = vst.msk [vmem:[%s251 + $0xa8] sm:$0xff] %vm1665, %v2189
      %2222 = vst.msk [vmem:[%s251 + $0xb0] sm:$0xff] %vm1665, %v2190
      %2223 = vst.msk [vmem:[%s251 + $0xb8] sm:$0xff] %vm1665, %v2191
      %2224 = vst.msk [vmem:[%s251 + $0xc0] sm:$0xff] %vm1665, %v2192
      %2225 = vst.msk [vmem:[%s251 + $0xc8] sm:$0xff] %vm1665, %v2193
      %2226 = vst.msk [vmem:[%s251 + $0xd0] sm:$0xff] %vm1665, %v2194
      %2227 = vst.msk [vmem:[%s251 + $0xd8] sm:$0xff] %vm1665, %v2195
      %2228 = vst.msk [vmem:[%s251 + $0xe0] sm:$0xff] %vm1665, %v2196
      %2229 = vst.msk [vmem:[%s251 + $0xe8] sm:$0xff] %vm1665, %v2197
      %2230 = vst.msk [vmem:[%s251 + $0xf0] sm:$0xff] %vm1665, %v2198
      %2231 = vst.msk [vmem:[%s251 + $0xf8] sm:$0xff] %vm1665, %v2199
      %p2232 = scmp.lt.s32.totalorder %s17, 1
      %s2233 = scalar_select %p2232, %s17, 1
      %s2234 = smul.addr %s2233, 32
      %s2235 = smul.addr %s2234, 8
      %s2236 = scalar_lea.vmem %s6, %s2235
      // Predicated region
      $region45: #{tpu_custom_call.1} parent=43 // pred_check
        %p2237 = pneg %p166
      $region46: #{tpu_custom_call.1} parent=43 // pred_check_branch
        %2239 = sbr.rel (%p2237) target = $region48
      $region47: #{tpu_custom_call.1} parent=43 // pred_region
        _
      $region48: #{tpu_custom_call.1} parent=43 // pred_fallthru
        _
    $region44: #{tpu_custom_call.1} parent=5 // pred_fallthru
      _
    %p2240 = scmp.le.s32.totalorder 2, %s12
    // Predicated region
    $region49: #{tpu_custom_call.1} parent=5 // pred_check
      %p2241 = pneg %p2240
    $region50: #{tpu_custom_call.1} parent=5 // pred_check_branch
      %2243 = sbr.rel (%p2241) target = $region52
    $region51: #{tpu_custom_call.1} parent=5 // pred_region
      %s2244 = ssub.s32 %s12, 2
      // Predicated region
      $region53: #{tpu_custom_call.1} parent=51 // pred_check
        %p2245 = pneg %p172
      $region54: #{tpu_custom_call.1} parent=51 // pred_check_branch
        %2247 = sbr.rel (%p2245) target = $region56
      $region55: #{tpu_custom_call.1} parent=51 // pred_region
        %p2248 = scmp.lt.s32.totalorder %s18, 1
        %s2249 = scalar_select %p2248, %s18, 1
        %s2250 = smul.addr %s2249, 32
        %s2251 = smul.addr %s2250, 8
        %s2252 = scalar_lea.vmem %s6, %s2251
      $region56: #{tpu_custom_call.1} parent=51 // pred_fallthru
        _
    $region52: #{tpu_custom_call.1} parent=5 // pred_fallthru
      _
  $region6: #{tpu_custom_call.1} parent=0 // loop_footer
    %s16 = sadd.s32 1, %s12
  $region7: #{tpu_custom_call.1} parent=0 // loop_footer_branch
    %11 = sbr.rel target = $region3
  $region8: #{tpu_custom_call.1} parent=0 // loop_exit
    _

</llo_original>
